<compile_context>
chip_gen: v5e
topology: v5e:2x2
jax: 0.10.0
libtpu: 0.0.40
codegen_flags: <defaults>
</compile_context>

<pallas_src>
import functools
import math

import jax
import jax.numpy as jnp
from jax.experimental import pallas as pl
from jax.experimental.pallas import tpu as pltpu


def _layer_norm(x, w, b, eps=1e-5):
    mu = jnp.mean(x, axis=-1, keepdims=True)
    var = jnp.mean((x - mu) ** 2, axis=-1, keepdims=True)
    return (x - mu) * jax.lax.rsqrt(var + eps) * w + b


def transformer_kernel(x_ref, pos_ref, ipw_ref, ipb_ref,
                       wqkv_ref, bqkv_ref, wo_ref, bo_ref,
                       ln1w_ref, ln1b_ref, ln2w_ref, ln2b_ref,
                       w1_ref, b1_ref, w2_ref, b2_ref,
                       out_ref, h_ref, *, nhead, approx_softmax):
    """Grid step (b, l): apply encoder layer l to batch tile b (h carried in VMEM)."""
    Bt, S, Din = x_ref.shape
    H = ipw_ref.shape[1]
    dk = H // nhead
    scale = 1.0 / math.sqrt(dk)
    cdt = ipw_ref.dtype          # matmul-input compute dtype (bf16 in the fast path)
    M = Bt * S                   # rows fed to every weight matmul (fills MXU M dim)
    layer = pl.program_id(1)
    n_layers = pl.num_programs(1)

    # ---- layer 0: input projection + positional encoding into the persistent scratch ----
    @pl.when(layer == 0)
    def _():
        x = x_ref[...].reshape(M, Din)
        h0 = jnp.dot(x.astype(cdt), ipw_ref[...], preferred_element_type=jnp.float32)
        h0 = h0.reshape(Bt, S, H) + ipb_ref[...] + pos_ref[...]   # broadcast (S,H) pos
        h_ref[...] = h0.reshape(M, H)

    h = h_ref[...]                                                # (M, H) f32 carry

    # ---- multi-head self attention (post-LN, dropout == identity) ----
    qkv = jnp.dot(h.astype(cdt), wqkv_ref[...], preferred_element_type=jnp.float32)
    qkv = (qkv + bqkv_ref[...]).reshape(Bt, S, 3 * H)

    heads = []
    for hh in range(nhead):  # statically unrolled over heads (3-D einsums per head)
        qh = qkv[:, :, hh * dk:(hh + 1) * dk].astype(cdt)
        kh = qkv[:, :, H + hh * dk:H + (hh + 1) * dk].astype(cdt)
        vh = qkv[:, :, 2 * H + hh * dk:2 * H + (hh + 1) * dk].astype(cdt)
        s = jnp.einsum("bqd,bkd->bqk", qh, kh,
                       preferred_element_type=jnp.float32) * scale
        s = s - jnp.max(s, axis=-1, keepdims=True)
        p = jnp.exp(s)
        denom = jnp.sum(p, axis=-1, keepdims=True)
        if approx_softmax:
            p = p * pl.reciprocal(denom, approx=True)
        else:
            p = p / denom
        heads.append(jnp.einsum("bqk,bkd->bqd", p.astype(cdt), vh,
                                preferred_element_type=jnp.float32))
    # Concatenate heads and do ONE output projection with full contraction depth K = H.
    ctx = jnp.concatenate(heads, axis=-1).reshape(M, H)
    attn = jnp.dot(ctx.astype(cdt), wo_ref[...],
                   preferred_element_type=jnp.float32) + bo_ref[...]
    h = _layer_norm(h + attn, ln1w_ref[...], ln1b_ref[...])

    # ---- feed-forward ----
    ff = jnp.dot(h.astype(cdt), w1_ref[...], preferred_element_type=jnp.float32) + b1_ref[...]
    ff = jnp.maximum(ff, 0.0)
    ff = jnp.dot(ff.astype(cdt), w2_ref[...], preferred_element_type=jnp.float32) + b2_ref[...]
    h = _layer_norm(h + ff, ln2w_ref[...], ln2b_ref[...])

    h_ref[...] = h

    @pl.when(layer == n_layers - 1)
    def _():
        out_ref[...] = h.reshape(Bt, S, H).astype(out_ref.dtype)


def _default_vmem_limit():
    """~85% of this chip's VMEM (v5e/v6e: ~108 MiB, v7x: ~54 MiB); safe fallback 48 MiB."""
    try:
        return int(0.85 * pltpu.get_tpu_info().vmem_capacity_bytes)
    except Exception:
        return 48 * 1024 * 1024


def transformer_sequential_learner(x, params, nhead, *,
                                   weight_dtype=jnp.bfloat16,
                                   out_dtype=jnp.float32,
                                   batch_tile=None,
                                   target_rows=256,   # ~MXU M per grid step; 512 OK on v6e
                                   approx_softmax=True,
                                   vmem_limit_bytes=None):
    """Returns (context (B,H), transformer_output (B,S,H)) like the PyTorch module."""
    B, S, Din = x.shape
    H = params["ipw"].shape[1]
    L = params["wqkv"].shape[0]
    FF = params["w1"].shape[2]
    assert S <= params["pos"].shape[1], "sequence longer than the positional table"

    if vmem_limit_bytes is None:
        vmem_limit_bytes = _default_vmem_limit()

    # Pick the batch tile so each grid step feeds ~target_rows rows to the MXU, but keep
    # at least 2 batch tiles so the "parallel" axis can split across v7x's 2 TensorCores.
    if batch_tile is None:
        bt = max(1, min(B, max(1, target_rows // max(S, 1))))
        while B % bt:
            bt -= 1
        while bt > 1 and B // bt < 2:
            bt -= 1
            while B % bt:
                bt -= 1
        batch_tile = bt
    Bt = batch_tile
    assert B % Bt == 0
    nb = B // Bt

    wdt = weight_dtype
    f32 = jnp.float32
    pos = params["pos"][0, :S, :].astype(f32)                     # (S, H), broadcast in-kernel

    args = (
        x,
        pos,
        params["ipw"].astype(wdt),
        params["ipb"].reshape(1, H).astype(f32),
        params["wqkv"].astype(wdt),
        params["bqkv"].reshape(L, 1, 3 * H).astype(f32),
        params["wo"].astype(wdt),
        params["bo"].reshape(L, 1, H).astype(f32),
        params["ln1w"].reshape(L, 1, H).astype(f32),
        params["ln1b"].reshape(L, 1, H).astype(f32),
        params["ln2w"].reshape(L, 1, H).astype(f32),
        params["ln2b"].reshape(L, 1, H).astype(f32),
        params["w1"].astype(wdt),
        params["b1"].reshape(L, 1, FF).astype(f32),
        params["w2"].astype(wdt),
        params["b2"].reshape(L, 1, H).astype(f32),
    )

    per_layer = lambda shape: pl.BlockSpec(shape, lambda b, l: (l, 0, 0))
    shared = lambda shape: pl.BlockSpec(shape, lambda b, l: (0,) * len(shape))

    in_specs = [
        pl.BlockSpec((Bt, S, Din), lambda b, l: (b, 0, 0)),       # x (read only at l==0)
        shared((S, H)),                                           # pos
        shared((Din, H)),                                         # input proj W
        shared((1, H)),                                           # input proj b
        per_layer((None, H, 3 * H)),                              # Wqkv  (layer-streamed)
        per_layer((None, 1, 3 * H)),                              # bqkv
        per_layer((None, H, H)),                                  # Wo
        per_layer((None, 1, H)),                                  # bo
        per_layer((None, 1, H)),                                  # ln1 w
        per_layer((None, 1, H)),                                  # ln1 b
        per_layer((None, 1, H)),                                  # ln2 w
        per_layer((None, 1, H)),                                  # ln2 b
        per_layer((None, H, FF)),                                 # W1
        per_layer((None, 1, FF)),                                 # b1
        per_layer((None, FF, H)),                                 # W2
        per_layer((None, 1, H)),                                  # b2
    ]

    out = pl.pallas_call(
        functools.partial(transformer_kernel, nhead=nhead, approx_softmax=approx_softmax),
        grid=(nb, L),
        in_specs=in_specs,
        out_specs=pl.BlockSpec((Bt, S, H), lambda b, l: (b, 0, 0)),
        out_shape=jax.ShapeDtypeStruct((B, S, H), out_dtype),
        scratch_shapes=[pltpu.VMEM((Bt * S, H), jnp.float32)],    # h carried across layers
        compiler_params=pltpu.CompilerParams(
            dimension_semantics=("parallel", "arbitrary"),
            vmem_limit_bytes=vmem_limit_bytes),
    )(*args)

    context = jnp.mean(out.astype(jnp.float32), axis=1)           # seq mean from lane-dense out
    return context, out


def init_params(key, input_size, hidden_size, num_layers, max_len=100):
    H, L, FF = hidden_size, num_layers, 4 * hidden_size
    keys = jax.random.split(key, 11)

    def w(k, shape, scale=0.05):
        return (scale * jax.random.normal(k, shape)).astype(jnp.float32)

    return {
        # pos_encoder is torch.zeros at init; random here so the add is exercised
        "pos":  w(keys[0], (1, max_len, H)),
        "ipw":  w(keys[1], (input_size, H)),
        "ipb":  w(keys[2], (1, H)),
        "wqkv": w(keys[3], (L, H, 3 * H)),
        "bqkv": w(keys[4], (L, 3 * H)),
        "wo":   w(keys[5], (L, H, H)),
        "bo":   w(keys[6], (L, H)),
        "ln1w": jnp.ones((L, H), jnp.float32),
        "ln1b": jnp.zeros((L, H), jnp.float32),
        "ln2w": jnp.ones((L, H), jnp.float32),
        "ln2b": jnp.zeros((L, H), jnp.float32),
        "w1":   w(keys[7], (L, H, FF)),
        "b1":   w(keys[8], (L, FF)),
        "w2":   w(keys[9], (L, FF, H)),
        "b2":   w(keys[10], (L, H)),
    }


def reference_forward(x, params, nhead, compute_dtype=jnp.float32):
    """Pure-JAX reference. compute_dtype mirrors the kernel's matmul-input precision."""
    B, S, _ = x.shape
    H = params["ipw"].shape[1]
    L = params["wqkv"].shape[0]
    dk = H // nhead
    cd = compute_dtype

    def mm(a, w):
        return jnp.dot(a.astype(cd), w.astype(cd), preferred_element_type=jnp.float32)

    h = mm(x, params["ipw"]) + params["ipb"] + params["pos"][:, :S, :]
    for l in range(L):
        qkv = mm(h, params["wqkv"][l]) + params["bqkv"][l]
        q, k, v = qkv[..., :H], qkv[..., H:2 * H], qkv[..., 2 * H:]
        qh = q.reshape(B, S, nhead, dk).transpose(0, 2, 1, 3).astype(cd)
        kh = k.reshape(B, S, nhead, dk).transpose(0, 2, 1, 3).astype(cd)
        vh = v.reshape(B, S, nhead, dk).transpose(0, 2, 1, 3).astype(cd)
        s = jnp.einsum("bhqd,bhkd->bhqk", qh, kh,
                       preferred_element_type=jnp.float32) / math.sqrt(dk)
        p = jax.nn.softmax(s, axis=-1)
        a = jnp.einsum("bhqk,bhkd->bhqd", p.astype(cd), vh,
                       preferred_element_type=jnp.float32)
        a = a.transpose(0, 2, 1, 3).reshape(B, S, H)
        a = mm(a, params["wo"][l]) + params["bo"][l]
        h = _layer_norm(h + a, params["ln1w"][l], params["ln1b"][l])
        ff = jnp.maximum(mm(h, params["w1"][l]) + params["b1"][l], 0.0)
        ff = mm(ff, params["w2"][l]) + params["b2"][l]
        h = _layer_norm(h + ff, params["ln2w"][l], params["ln2b"][l])
    return jnp.mean(h, axis=1), h


if __name__ == "__main__":
    B, S, Din, H, NHEAD, L = 2, 8, 16, 32, 4, 2
    key = jax.random.PRNGKey(0)
    kx, kp = jax.random.split(key)
    x = jax.random.normal(kx, (B, S, Din), dtype=jnp.float32)
    params = init_params(kp, Din, H, L)

    fwd = jax.jit(functools.partial(transformer_sequential_learner, nhead=NHEAD))
    ctx, out = fwd(x, params)
    jax.block_until_ready((ctx, out))
    assert ctx.shape == (B, H) and out.shape == (B, S, H)

    # 1) Tight check against a reference that mirrors the kernel's bf16 matmul precision.
    ctx_ref, out_ref = reference_forward(x, params, NHEAD, compute_dtype=jnp.bfloat16)
    assert jnp.allclose(out, out_ref, atol=5e-3, rtol=5e-3)
    assert jnp.allclose(ctx, ctx_ref, atol=5e-3, rtol=5e-3)

    # 2) Loose sanity check against the full-f32 module semantics.
    ctx_f32, out_f32 = reference_forward(x, params, NHEAD, compute_dtype=jnp.float32)
    assert jnp.allclose(out, out_f32, atol=1e-1, rtol=1e-1)
    assert jnp.allclose(ctx, ctx_f32, atol=1e-1, rtol=1e-1)

    print("KERNEL_OK")
</pallas_src>

<mosaic_0001>
module attributes {stable_mosaic.version = 11 : i64} {
  func.func @transformer_kernel(%arg0: i32, %arg1: i32, %arg2: memref<1x8x16xf32, #tpu.memory_space<vmem>>, %arg3: memref<8x32xf32, #tpu.memory_space<vmem>>, %arg4: memref<16x32xbf16, #tpu.memory_space<vmem>>, %arg5: memref<1x32xf32, #tpu.memory_space<vmem>>, %arg6: memref<1x32x96xbf16, #tpu.memory_space<vmem>>, %arg7: memref<1x1x96xf32, #tpu.memory_space<vmem>>, %arg8: memref<1x32x32xbf16, #tpu.memory_space<vmem>>, %arg9: memref<1x1x32xf32, #tpu.memory_space<vmem>>, %arg10: memref<1x1x32xf32, #tpu.memory_space<vmem>>, %arg11: memref<1x1x32xf32, #tpu.memory_space<vmem>>, %arg12: memref<1x1x32xf32, #tpu.memory_space<vmem>>, %arg13: memref<1x1x32xf32, #tpu.memory_space<vmem>>, %arg14: memref<1x32x128xbf16, #tpu.memory_space<vmem>>, %arg15: memref<1x1x128xf32, #tpu.memory_space<vmem>>, %arg16: memref<1x128x32xbf16, #tpu.memory_space<vmem>>, %arg17: memref<1x1x32xf32, #tpu.memory_space<vmem>>, %arg18: memref<1x8x32xf32, #tpu.memory_space<vmem>>, %arg19: memref<8x32xf32, #tpu.memory_space<vmem>>) attributes {dimension_semantics = [#tpu.dimension_semantics<parallel>, #tpu.dimension_semantics<arbitrary>], iteration_bounds = array<i64: 2, 2>, scalar_prefetch = 0 : i64, scratch_operands = 1 : i64, tpu.core_type = #tpu.core_type<tc>, window_params = [{transform_indices = @transform_0, window_bounds = array<i64: 1, 8, 16>}, {pipeline_mode = #tpu.pipeline_mode<synchronous>, transform_indices = @transform_1, window_bounds = array<i64: 8, 32>}, {pipeline_mode = #tpu.pipeline_mode<synchronous>, transform_indices = @transform_2, window_bounds = array<i64: 16, 32>}, {pipeline_mode = #tpu.pipeline_mode<synchronous>, transform_indices = @transform_3, window_bounds = array<i64: 1, 32>}, {transform_indices = @transform_4, window_bounds = array<i64: 1, 32, 96>}, {transform_indices = @transform_5, window_bounds = array<i64: 1, 1, 96>}, {transform_indices = @transform_6, window_bounds = array<i64: 1, 32, 32>}, {transform_indices = @transform_7, window_bounds = array<i64: 1, 1, 32>}, {transform_indices = @transform_8, window_bounds = array<i64: 1, 1, 32>}, {transform_indices = @transform_9, window_bounds = array<i64: 1, 1, 32>}, {transform_indices = @transform_10, window_bounds = array<i64: 1, 1, 32>}, {transform_indices = @transform_11, window_bounds = array<i64: 1, 1, 32>}, {transform_indices = @transform_12, window_bounds = array<i64: 1, 32, 128>}, {transform_indices = @transform_13, window_bounds = array<i64: 1, 1, 128>}, {transform_indices = @transform_14, window_bounds = array<i64: 1, 128, 32>}, {transform_indices = @transform_15, window_bounds = array<i64: 1, 1, 32>}, {transform_indices = @transform_16, window_bounds = array<i64: 1, 8, 32>}]} {
    %c0_i32 = arith.constant 0 : i32
    %0 = arith.cmpi eq, %arg1, %c0_i32 : i32
    %1 = arith.extui %0 : i1 to i32
    %c0_i32_0 = arith.constant 0 : i32
    %2 = arith.cmpi ne, %1, %c0_i32_0 : i32
    scf.if %2 {
      %c0_75 = arith.constant 0 : index
      %c0_76 = arith.constant 0 : index
      %c0_77 = arith.constant 0 : index
      %183 = vector.load %arg2[%c0_75, %c0_76, %c0_77] : memref<1x8x16xf32, #tpu.memory_space<vmem>>, vector<1x8x16xf32>
      %184 = vector.shape_cast %183 : vector<1x8x16xf32> to vector<8x16xf32>
      %185 = arith.truncf %184 : vector<8x16xf32> to vector<8x16xbf16>
      %c0_78 = arith.constant 0 : index
      %c0_79 = arith.constant 0 : index
      %186 = vector.load %arg4[%c0_78, %c0_79] : memref<16x32xbf16, #tpu.memory_space<vmem>>, vector<16x32xbf16>
      %cst_80 = arith.constant dense<0.000000e+00> : vector<8x32xf32>
      %187 = tpu.matmul %185, %186, %cst_80 {dimension_numbers = #tpu.dot_dimension_numbers<[1], [0], [0], [1], [0, 0, 1, 1], [], []>} : vector<8x16xbf16>, vector<16x32xbf16>, vector<8x32xf32> -> vector<8x32xf32>
      %188 = vector.shape_cast %187 : vector<8x32xf32> to vector<1x8x32xf32>
      %c0_81 = arith.constant 0 : index
      %c0_82 = arith.constant 0 : index
      %189 = vector.load %arg5[%c0_81, %c0_82] : memref<1x32xf32, #tpu.memory_space<vmem>>, vector<1x32xf32>
      %190 = vector.shape_cast %189 : vector<1x32xf32> to vector<1x1x32xf32>
      %191 = vector.broadcast %190 : vector<1x1x32xf32> to vector<1x8x32xf32>
      %192 = arith.addf %188, %191 : vector<1x8x32xf32>
      %c0_83 = arith.constant 0 : index
      %c0_84 = arith.constant 0 : index
      %193 = vector.load %arg3[%c0_83, %c0_84] : memref<8x32xf32, #tpu.memory_space<vmem>>, vector<8x32xf32>
      %194 = vector.shape_cast %193 : vector<8x32xf32> to vector<1x8x32xf32>
      %195 = arith.addf %192, %194 : vector<1x8x32xf32>
      %196 = vector.shape_cast %195 : vector<1x8x32xf32> to vector<8x32xf32>
      %c0_85 = arith.constant 0 : index
      %c0_86 = arith.constant 0 : index
      %197 = vector.load %arg19[%c0_85, %c0_86] : memref<8x32xf32, #tpu.memory_space<vmem>>, vector<8x32xf32>
      tpu.vector_store %arg19[%c0_85, %c0_86], %196 {strides = array<i32>} : memref<8x32xf32, #tpu.memory_space<vmem>>, vector<8x32xf32>,
    } else {
    }
    %c0 = arith.constant 0 : index
    %c0_1 = arith.constant 0 : index
    %3 = vector.load %arg19[%c0, %c0_1] : memref<8x32xf32, #tpu.memory_space<vmem>>, vector<8x32xf32>
    %4 = arith.truncf %3 : vector<8x32xf32> to vector<8x32xbf16>
    %c0_2 = arith.constant 0 : index
    %c0_3 = arith.constant 0 : index
    %c0_4 = arith.constant 0 : index
    %5 = vector.load %arg6[%c0_2, %c0_3, %c0_4] : memref<1x32x96xbf16, #tpu.memory_space<vmem>>, vector<1x32x96xbf16>
    %6 = vector.shape_cast %5 : vector<1x32x96xbf16> to vector<32x96xbf16>
    %cst = arith.constant dense<0.000000e+00> : vector<8x96xf32>
    %7 = tpu.matmul %4, %6, %cst {dimension_numbers = #tpu.dot_dimension_numbers<[1], [0], [0], [1], [0, 0, 1, 1], [], []>} : vector<8x32xbf16>, vector<32x96xbf16>, vector<8x96xf32> -> vector<8x96xf32>
    %c0_5 = arith.constant 0 : index
    %c0_6 = arith.constant 0 : index
    %c0_7 = arith.constant 0 : index
    %8 = vector.load %arg7[%c0_5, %c0_6, %c0_7] : memref<1x1x96xf32, #tpu.memory_space<vmem>>, vector<1x1x96xf32>
    %9 = vector.shape_cast %8 : vector<1x1x96xf32> to vector<1x96xf32>
    %10 = vector.broadcast %9 : vector<1x96xf32> to vector<8x96xf32>
    %11 = arith.addf %7, %10 : vector<8x96xf32>
    %12 = vector.shape_cast %11 : vector<8x96xf32> to vector<1x8x96xf32>
    %13 = vector.extract_strided_slice %12 {offsets = [0, 0, 0], sizes = [1, 8, 8], strides = [1, 1, 1]} : vector<1x8x96xf32> to vector<1x8x8xf32>
    %14 = arith.truncf %13 : vector<1x8x8xf32> to vector<1x8x8xbf16>
    %15 = vector.extract_strided_slice %12 {offsets = [0, 0, 32], sizes = [1, 8, 8], strides = [1, 1, 1]} : vector<1x8x96xf32> to vector<1x8x8xf32>
    %16 = arith.truncf %15 : vector<1x8x8xf32> to vector<1x8x8xbf16>
    %17 = vector.extract_strided_slice %12 {offsets = [0, 0, 64], sizes = [1, 8, 8], strides = [1, 1, 1]} : vector<1x8x96xf32> to vector<1x8x8xf32>
    %18 = arith.truncf %17 : vector<1x8x8xf32> to vector<1x8x8xbf16>
    "tpu.trace_start"() <{level = 10 : i32, message = "bqd,bkd->bqk"}> : () -> ()
    %cst_8 = arith.constant dense<0.000000e+00> : vector<1x8x8xf32>
    %19 = tpu.matmul %14, %16, %cst_8 {dimension_numbers = #tpu.dot_dimension_numbers<[2], [2], [1], [1], [0, 0, 0, 1, 1, 1], [0], [0]>} : vector<1x8x8xbf16>, vector<1x8x8xbf16>, vector<1x8x8xf32> -> vector<1x8x8xf32>
    "tpu.trace_stop"() : () -> ()
    %cst_9 = arith.constant 0.353553385 : f32
    %20 = vector.broadcast %cst_9 : f32 to vector<1x8x8xf32>
    %21 = arith.mulf %19, %20 : vector<1x8x8xf32>
    %cst_10 = arith.constant dense<0xFF800000> : vector<1x8xf32>
    %22 = vector.multi_reduction <maximumf>, %21, %cst_10 [2] : vector<1x8x8xf32> to vector<1x8xf32>
    %23 = vector.shape_cast %22 : vector<1x8xf32> to vector<1x8x1xf32>
    %24 = vector.broadcast %23 : vector<1x8x1xf32> to vector<1x8x8xf32>
    %25 = arith.subf %21, %24 : vector<1x8x8xf32>
    %26 = math.exp %25 : vector<1x8x8xf32>
    %cst_11 = arith.constant dense<0.000000e+00> : vector<1x8xf32>
    %27 = vector.multi_reduction <add>, %26, %cst_11 [2] : vector<1x8x8xf32> to vector<1x8xf32>
    %28 = vector.shape_cast %27 : vector<1x8xf32> to vector<1x8x1xf32>
    %29 = tpu.reciprocal %28 {approx = true} : vector<1x8x1xf32> -> vector<1x8x1xf32>
    %30 = vector.broadcast %29 : vector<1x8x1xf32> to vector<1x8x8xf32>
    %31 = arith.mulf %26, %30 : vector<1x8x8xf32>
    %32 = arith.truncf %31 : vector<1x8x8xf32> to vector<1x8x8xbf16>
    "tpu.trace_start"() <{level = 10 : i32, message = "bqk,bkd->bqd"}> : () -> ()
    %cst_12 = arith.constant dense<0.000000e+00> : vector<1x8x8xf32>
    %33 = tpu.matmul %32, %18, %cst_12 {dimension_numbers = #tpu.dot_dimension_numbers<[2], [1], [1], [2], [0, 0, 0, 1, 1, 2], [0], [0]>} : vector<1x8x8xbf16>, vector<1x8x8xbf16>, vector<1x8x8xf32> -> vector<1x8x8xf32>
    "tpu.trace_stop"() : () -> ()
    %34 = vector.extract_strided_slice %12 {offsets = [0, 0, 8], sizes = [1, 8, 8], strides = [1, 1, 1]} : vector<1x8x96xf32> to vector<1x8x8xf32>
    %35 = arith.truncf %34 : vector<1x8x8xf32> to vector<1x8x8xbf16>
    %36 = vector.extract_strided_slice %12 {offsets = [0, 0, 40], sizes = [1, 8, 8], strides = [1, 1, 1]} : vector<1x8x96xf32> to vector<1x8x8xf32>
    %37 = arith.truncf %36 : vector<1x8x8xf32> to vector<1x8x8xbf16>
    %38 = vector.extract_strided_slice %12 {offsets = [0, 0, 72], sizes = [1, 8, 8], strides = [1, 1, 1]} : vector<1x8x96xf32> to vector<1x8x8xf32>
    %39 = arith.truncf %38 : vector<1x8x8xf32> to vector<1x8x8xbf16>
    "tpu.trace_start"() <{level = 10 : i32, message = "bqd,bkd->bqk"}> : () -> ()
    %cst_13 = arith.constant dense<0.000000e+00> : vector<1x8x8xf32>
    %40 = tpu.matmul %35, %37, %cst_13 {dimension_numbers = #tpu.dot_dimension_numbers<[2], [2], [1], [1], [0, 0, 0, 1, 1, 1], [0], [0]>} : vector<1x8x8xbf16>, vector<1x8x8xbf16>, vector<1x8x8xf32> -> vector<1x8x8xf32>
    "tpu.trace_stop"() : () -> ()
    %cst_14 = arith.constant 0.353553385 : f32
    %41 = vector.broadcast %cst_14 : f32 to vector<1x8x8xf32>
    %42 = arith.mulf %40, %41 : vector<1x8x8xf32>
    %cst_15 = arith.constant dense<0xFF800000> : vector<1x8xf32>
    %43 = vector.multi_reduction <maximumf>, %42, %cst_15 [2] : vector<1x8x8xf32> to vector<1x8xf32>
    %44 = vector.shape_cast %43 : vector<1x8xf32> to vector<1x8x1xf32>
    %45 = vector.broadcast %44 : vector<1x8x1xf32> to vector<1x8x8xf32>
    %46 = arith.subf %42, %45 : vector<1x8x8xf32>
    %47 = math.exp %46 : vector<1x8x8xf32>
    %cst_16 = arith.constant dense<0.000000e+00> : vector<1x8xf32>
    %48 = vector.multi_reduction <add>, %47, %cst_16 [2] : vector<1x8x8xf32> to vector<1x8xf32>
    %49 = vector.shape_cast %48 : vector<1x8xf32> to vector<1x8x1xf32>
    %50 = tpu.reciprocal %49 {approx = true} : vector<1x8x1xf32> -> vector<1x8x1xf32>
    %51 = vector.broadcast %50 : vector<1x8x1xf32> to vector<1x8x8xf32>
    %52 = arith.mulf %47, %51 : vector<1x8x8xf32>
    %53 = arith.truncf %52 : vector<1x8x8xf32> to vector<1x8x8xbf16>
    "tpu.trace_start"() <{level = 10 : i32, message = "bqk,bkd->bqd"}> : () -> ()
    %cst_17 = arith.constant dense<0.000000e+00> : vector<1x8x8xf32>
    %54 = tpu.matmul %53, %39, %cst_17 {dimension_numbers = #tpu.dot_dimension_numbers<[2], [1], [1], [2], [0, 0, 0, 1, 1, 2], [0], [0]>} : vector<1x8x8xbf16>, vector<1x8x8xbf16>, vector<1x8x8xf32> -> vector<1x8x8xf32>
    "tpu.trace_stop"() : () -> ()
    %55 = vector.extract_strided_slice %12 {offsets = [0, 0, 16], sizes = [1, 8, 8], strides = [1, 1, 1]} : vector<1x8x96xf32> to vector<1x8x8xf32>
    %56 = arith.truncf %55 : vector<1x8x8xf32> to vector<1x8x8xbf16>
    %57 = vector.extract_strided_slice %12 {offsets = [0, 0, 48], sizes = [1, 8, 8], strides = [1, 1, 1]} : vector<1x8x96xf32> to vector<1x8x8xf32>
    %58 = arith.truncf %57 : vector<1x8x8xf32> to vector<1x8x8xbf16>
    %59 = vector.extract_strided_slice %12 {offsets = [0, 0, 80], sizes = [1, 8, 8], strides = [1, 1, 1]} : vector<1x8x96xf32> to vector<1x8x8xf32>
    %60 = arith.truncf %59 : vector<1x8x8xf32> to vector<1x8x8xbf16>
    "tpu.trace_start"() <{level = 10 : i32, message = "bqd,bkd->bqk"}> : () -> ()
    %cst_18 = arith.constant dense<0.000000e+00> : vector<1x8x8xf32>
    %61 = tpu.matmul %56, %58, %cst_18 {dimension_numbers = #tpu.dot_dimension_numbers<[2], [2], [1], [1], [0, 0, 0, 1, 1, 1], [0], [0]>} : vector<1x8x8xbf16>, vector<1x8x8xbf16>, vector<1x8x8xf32> -> vector<1x8x8xf32>
    "tpu.trace_stop"() : () -> ()
    %cst_19 = arith.constant 0.353553385 : f32
    %62 = vector.broadcast %cst_19 : f32 to vector<1x8x8xf32>
    %63 = arith.mulf %61, %62 : vector<1x8x8xf32>
    %cst_20 = arith.constant dense<0xFF800000> : vector<1x8xf32>
    %64 = vector.multi_reduction <maximumf>, %63, %cst_20 [2] : vector<1x8x8xf32> to vector<1x8xf32>
    %65 = vector.shape_cast %64 : vector<1x8xf32> to vector<1x8x1xf32>
    %66 = vector.broadcast %65 : vector<1x8x1xf32> to vector<1x8x8xf32>
    %67 = arith.subf %63, %66 : vector<1x8x8xf32>
    %68 = math.exp %67 : vector<1x8x8xf32>
    %cst_21 = arith.constant dense<0.000000e+00> : vector<1x8xf32>
    %69 = vector.multi_reduction <add>, %68, %cst_21 [2] : vector<1x8x8xf32> to vector<1x8xf32>
    %70 = vector.shape_cast %69 : vector<1x8xf32> to vector<1x8x1xf32>
    %71 = tpu.reciprocal %70 {approx = true} : vector<1x8x1xf32> -> vector<1x8x1xf32>
    %72 = vector.broadcast %71 : vector<1x8x1xf32> to vector<1x8x8xf32>
    %73 = arith.mulf %68, %72 : vector<1x8x8xf32>
    %74 = arith.truncf %73 : vector<1x8x8xf32> to vector<1x8x8xbf16>
    "tpu.trace_start"() <{level = 10 : i32, message = "bqk,bkd->bqd"}> : () -> ()
    %cst_22 = arith.constant dense<0.000000e+00> : vector<1x8x8xf32>
    %75 = tpu.matmul %74, %60, %cst_22 {dimension_numbers = #tpu.dot_dimension_numbers<[2], [1], [1], [2], [0, 0, 0, 1, 1, 2], [0], [0]>} : vector<1x8x8xbf16>, vector<1x8x8xbf16>, vector<1x8x8xf32> -> vector<1x8x8xf32>
    "tpu.trace_stop"() : () -> ()
    %76 = vector.extract_strided_slice %12 {offsets = [0, 0, 24], sizes = [1, 8, 8], strides = [1, 1, 1]} : vector<1x8x96xf32> to vector<1x8x8xf32>
    %77 = arith.truncf %76 : vector<1x8x8xf32> to vector<1x8x8xbf16>
    %78 = vector.extract_strided_slice %12 {offsets = [0, 0, 56], sizes = [1, 8, 8], strides = [1, 1, 1]} : vector<1x8x96xf32> to vector<1x8x8xf32>
    %79 = arith.truncf %78 : vector<1x8x8xf32> to vector<1x8x8xbf16>
    %80 = vector.extract_strided_slice %12 {offsets = [0, 0, 88], sizes = [1, 8, 8], strides = [1, 1, 1]} : vector<1x8x96xf32> to vector<1x8x8xf32>
    %81 = arith.truncf %80 : vector<1x8x8xf32> to vector<1x8x8xbf16>
    "tpu.trace_start"() <{level = 10 : i32, message = "bqd,bkd->bqk"}> : () -> ()
    %cst_23 = arith.constant dense<0.000000e+00> : vector<1x8x8xf32>
    %82 = tpu.matmul %77, %79, %cst_23 {dimension_numbers = #tpu.dot_dimension_numbers<[2], [2], [1], [1], [0, 0, 0, 1, 1, 1], [0], [0]>} : vector<1x8x8xbf16>, vector<1x8x8xbf16>, vector<1x8x8xf32> -> vector<1x8x8xf32>
    "tpu.trace_stop"() : () -> ()
    %cst_24 = arith.constant 0.353553385 : f32
    %83 = vector.broadcast %cst_24 : f32 to vector<1x8x8xf32>
    %84 = arith.mulf %82, %83 : vector<1x8x8xf32>
    %cst_25 = arith.constant dense<0xFF800000> : vector<1x8xf32>
    %85 = vector.multi_reduction <maximumf>, %84, %cst_25 [2] : vector<1x8x8xf32> to vector<1x8xf32>
    %86 = vector.shape_cast %85 : vector<1x8xf32> to vector<1x8x1xf32>
    %87 = vector.broadcast %86 : vector<1x8x1xf32> to vector<1x8x8xf32>
    %88 = arith.subf %84, %87 : vector<1x8x8xf32>
    %89 = math.exp %88 : vector<1x8x8xf32>
    %cst_26 = arith.constant dense<0.000000e+00> : vector<1x8xf32>
    %90 = vector.multi_reduction <add>, %89, %cst_26 [2] : vector<1x8x8xf32> to vector<1x8xf32>
    %91 = vector.shape_cast %90 : vector<1x8xf32> to vector<1x8x1xf32>
    %92 = tpu.reciprocal %91 {approx = true} : vector<1x8x1xf32> -> vector<1x8x1xf32>
    %93 = vector.broadcast %92 : vector<1x8x1xf32> to vector<1x8x8xf32>
    %94 = arith.mulf %89, %93 : vector<1x8x8xf32>
    %95 = arith.truncf %94 : vector<1x8x8xf32> to vector<1x8x8xbf16>
    "tpu.trace_start"() <{level = 10 : i32, message = "bqk,bkd->bqd"}> : () -> ()
    %cst_27 = arith.constant dense<0.000000e+00> : vector<1x8x8xf32>
    %96 = tpu.matmul %95, %81, %cst_27 {dimension_numbers = #tpu.dot_dimension_numbers<[2], [1], [1], [2], [0, 0, 0, 1, 1, 2], [0], [0]>} : vector<1x8x8xbf16>, vector<1x8x8xbf16>, vector<1x8x8xf32> -> vector<1x8x8xf32>
    "tpu.trace_stop"() : () -> ()
    %97 = tpu.concatenate %33, %54, %75, %96 in 2 : vector<1x8x8xf32>, vector<1x8x8xf32>, vector<1x8x8xf32>, vector<1x8x8xf32> -> vector<1x8x32xf32>
    %98 = vector.shape_cast %97 : vector<1x8x32xf32> to vector<8x32xf32>
    %99 = arith.truncf %98 : vector<8x32xf32> to vector<8x32xbf16>
    %c0_28 = arith.constant 0 : index
    %c0_29 = arith.constant 0 : index
    %c0_30 = arith.constant 0 : index
    %100 = vector.load %arg8[%c0_28, %c0_29, %c0_30] : memref<1x32x32xbf16, #tpu.memory_space<vmem>>, vector<1x32x32xbf16>
    %101 = vector.shape_cast %100 : vector<1x32x32xbf16> to vector<32x32xbf16>
    %cst_31 = arith.constant dense<0.000000e+00> : vector<8x32xf32>
    %102 = tpu.matmul %99, %101, %cst_31 {dimension_numbers = #tpu.dot_dimension_numbers<[1], [0], [0], [1], [0, 0, 1, 1], [], []>} : vector<8x32xbf16>, vector<32x32xbf16>, vector<8x32xf32> -> vector<8x32xf32>
    %c0_32 = arith.constant 0 : index
    %c0_33 = arith.constant 0 : index
    %c0_34 = arith.constant 0 : index
    %103 = vector.load %arg9[%c0_32, %c0_33, %c0_34] : memref<1x1x32xf32, #tpu.memory_space<vmem>>, vector<1x1x32xf32>
    %104 = vector.shape_cast %103 : vector<1x1x32xf32> to vector<1x32xf32>
    %105 = vector.broadcast %104 : vector<1x32xf32> to vector<8x32xf32>
    %106 = arith.addf %102, %105 : vector<8x32xf32>
    %107 = arith.addf %3, %106 : vector<8x32xf32>
    %c0_35 = arith.constant 0 : index
    %c0_36 = arith.constant 0 : index
    %c0_37 = arith.constant 0 : index
    %108 = vector.load %arg10[%c0_35, %c0_36, %c0_37] : memref<1x1x32xf32, #tpu.memory_space<vmem>>, vector<1x1x32xf32>
    %109 = vector.shape_cast %108 : vector<1x1x32xf32> to vector<1x32xf32>
    %c0_38 = arith.constant 0 : index
    %c0_39 = arith.constant 0 : index
    %c0_40 = arith.constant 0 : index
    %110 = vector.load %arg11[%c0_38, %c0_39, %c0_40] : memref<1x1x32xf32, #tpu.memory_space<vmem>>, vector<1x1x32xf32>
    %111 = vector.shape_cast %110 : vector<1x1x32xf32> to vector<1x32xf32>
    %cst_41 = arith.constant dense<0.000000e+00> : vector<8xf32>
    %112 = vector.multi_reduction <add>, %107, %cst_41 [1] : vector<8x32xf32> to vector<8xf32>
    %113 = vector.shape_cast %112 : vector<8xf32> to vector<8x1xf32>
    %cst_42 = arith.constant 3.200000e+01 : f32
    %114 = vector.broadcast %cst_42 : f32 to vector<8x1xf32>
    %115 = arith.divf %113, %114 : vector<8x1xf32>
    %116 = vector.broadcast %115 : vector<8x1xf32> to vector<8x32xf32>
    %117 = arith.subf %107, %116 : vector<8x32xf32>
    %118 = arith.mulf %117, %117 : vector<8x32xf32>
    %cst_43 = arith.constant dense<0.000000e+00> : vector<8xf32>
    %119 = vector.multi_reduction <add>, %118, %cst_43 [1] : vector<8x32xf32> to vector<8xf32>
    %120 = vector.shape_cast %119 : vector<8xf32> to vector<8x1xf32>
    %cst_44 = arith.constant 3.200000e+01 : f32
    %121 = vector.broadcast %cst_44 : f32 to vector<8x1xf32>
    %122 = arith.divf %120, %121 : vector<8x1xf32>
    %123 = vector.broadcast %115 : vector<8x1xf32> to vector<8x32xf32>
    %124 = arith.subf %107, %123 : vector<8x32xf32>
    %cst_45 = arith.constant 9.99999974E-6 : f32
    %125 = vector.broadcast %cst_45 : f32 to vector<8x1xf32>
    %126 = arith.addf %122, %125 : vector<8x1xf32>
    %127 = math.rsqrt %126 : vector<8x1xf32>
    %128 = vector.broadcast %127 : vector<8x1xf32> to vector<8x32xf32>
    %129 = arith.mulf %124, %128 : vector<8x32xf32>
    %130 = vector.broadcast %109 : vector<1x32xf32> to vector<8x32xf32>
    %131 = arith.mulf %129, %130 : vector<8x32xf32>
    %132 = vector.broadcast %111 : vector<1x32xf32> to vector<8x32xf32>
    %133 = arith.addf %131, %132 : vector<8x32xf32>
    %134 = arith.truncf %133 : vector<8x32xf32> to vector<8x32xbf16>
    %c0_46 = arith.constant 0 : index
    %c0_47 = arith.constant 0 : index
    %c0_48 = arith.constant 0 : index
    %135 = vector.load %arg14[%c0_46, %c0_47, %c0_48] : memref<1x32x128xbf16, #tpu.memory_space<vmem>>, vector<1x32x128xbf16>
    %136 = vector.shape_cast %135 : vector<1x32x128xbf16> to vector<32x128xbf16>
    %cst_49 = arith.constant dense<0.000000e+00> : vector<8x128xf32>
    %137 = tpu.matmul %134, %136, %cst_49 {dimension_numbers = #tpu.dot_dimension_numbers<[1], [0], [0], [1], [0, 0, 1, 1], [], []>} : vector<8x32xbf16>, vector<32x128xbf16>, vector<8x128xf32> -> vector<8x128xf32>
    %c0_50 = arith.constant 0 : index
    %c0_51 = arith.constant 0 : index
    %c0_52 = arith.constant 0 : index
    %138 = vector.load %arg15[%c0_50, %c0_51, %c0_52] : memref<1x1x128xf32, #tpu.memory_space<vmem>>, vector<1x1x128xf32>
    %139 = vector.shape_cast %138 : vector<1x1x128xf32> to vector<1x128xf32>
    %140 = vector.broadcast %139 : vector<1x128xf32> to vector<8x128xf32>
    %141 = arith.addf %137, %140 : vector<8x128xf32>
    %cst_53 = arith.constant 0.000000e+00 : f32
    %142 = vector.broadcast %cst_53 : f32 to vector<8x128xf32>
    %143 = arith.maximumf %141, %142 : vector<8x128xf32>
    %144 = arith.truncf %143 : vector<8x128xf32> to vector<8x128xbf16>
    %c0_54 = arith.constant 0 : index
    %c0_55 = arith.constant 0 : index
    %c0_56 = arith.constant 0 : index
    %145 = vector.load %arg16[%c0_54, %c0_55, %c0_56] : memref<1x128x32xbf16, #tpu.memory_space<vmem>>, vector<1x128x32xbf16>
    %146 = vector.shape_cast %145 : vector<1x128x32xbf16> to vector<128x32xbf16>
    %cst_57 = arith.constant dense<0.000000e+00> : vector<8x32xf32>
    %147 = tpu.matmul %144, %146, %cst_57 {dimension_numbers = #tpu.dot_dimension_numbers<[1], [0], [0], [1], [0, 0, 1, 1], [], []>} : vector<8x128xbf16>, vector<128x32xbf16>, vector<8x32xf32> -> vector<8x32xf32>
    %c0_58 = arith.constant 0 : index
    %c0_59 = arith.constant 0 : index
    %c0_60 = arith.constant 0 : index
    %148 = vector.load %arg17[%c0_58, %c0_59, %c0_60] : memref<1x1x32xf32, #tpu.memory_space<vmem>>, vector<1x1x32xf32>
    %149 = vector.shape_cast %148 : vector<1x1x32xf32> to vector<1x32xf32>
    %150 = vector.broadcast %149 : vector<1x32xf32> to vector<8x32xf32>
    %151 = arith.addf %147, %150 : vector<8x32xf32>
    %152 = arith.addf %133, %151 : vector<8x32xf32>
    %c0_61 = arith.constant 0 : index
    %c0_62 = arith.constant 0 : index
    %c0_63 = arith.constant 0 : index
    %153 = vector.load %arg12[%c0_61, %c0_62, %c0_63] : memref<1x1x32xf32, #tpu.memory_space<vmem>>, vector<1x1x32xf32>
    %154 = vector.shape_cast %153 : vector<1x1x32xf32> to vector<1x32xf32>
    %c0_64 = arith.constant 0 : index
    %c0_65 = arith.constant 0 : index
    %c0_66 = arith.constant 0 : index
    %155 = vector.load %arg13[%c0_64, %c0_65, %c0_66] : memref<1x1x32xf32, #tpu.memory_space<vmem>>, vector<1x1x32xf32>
    %156 = vector.shape_cast %155 : vector<1x1x32xf32> to vector<1x32xf32>
    %cst_67 = arith.constant dense<0.000000e+00> : vector<8xf32>
    %157 = vector.multi_reduction <add>, %152, %cst_67 [1] : vector<8x32xf32> to vector<8xf32>
    %158 = vector.shape_cast %157 : vector<8xf32> to vector<8x1xf32>
    %cst_68 = arith.constant 3.200000e+01 : f32
    %159 = vector.broadcast %cst_68 : f32 to vector<8x1xf32>
    %160 = arith.divf %158, %159 : vector<8x1xf32>
    %161 = vector.broadcast %160 : vector<8x1xf32> to vector<8x32xf32>
    %162 = arith.subf %152, %161 : vector<8x32xf32>
    %163 = arith.mulf %162, %162 : vector<8x32xf32>
    %cst_69 = arith.constant dense<0.000000e+00> : vector<8xf32>
    %164 = vector.multi_reduction <add>, %163, %cst_69 [1] : vector<8x32xf32> to vector<8xf32>
    %165 = vector.shape_cast %164 : vector<8xf32> to vector<8x1xf32>
    %cst_70 = arith.constant 3.200000e+01 : f32
    %166 = vector.broadcast %cst_70 : f32 to vector<8x1xf32>
    %167 = arith.divf %165, %166 : vector<8x1xf32>
    %168 = vector.broadcast %160 : vector<8x1xf32> to vector<8x32xf32>
    %169 = arith.subf %152, %168 : vector<8x32xf32>
    %cst_71 = arith.constant 9.99999974E-6 : f32
    %170 = vector.broadcast %cst_71 : f32 to vector<8x1xf32>
    %171 = arith.addf %167, %170 : vector<8x1xf32>
    %172 = math.rsqrt %171 : vector<8x1xf32>
    %173 = vector.broadcast %172 : vector<8x1xf32> to vector<8x32xf32>
    %174 = arith.mulf %169, %173 : vector<8x32xf32>
    %175 = vector.broadcast %154 : vector<1x32xf32> to vector<8x32xf32>
    %176 = arith.mulf %174, %175 : vector<8x32xf32>
    %177 = vector.broadcast %156 : vector<1x32xf32> to vector<8x32xf32>
    %178 = arith.addf %176, %177 : vector<8x32xf32>
    %c0_72 = arith.constant 0 : index
    %c0_73 = arith.constant 0 : index
    %179 = vector.load %arg19[%c0_72, %c0_73] : memref<8x32xf32, #tpu.memory_space<vmem>>, vector<8x32xf32>
    tpu.vector_store %arg19[%c0_72, %c0_73], %178 {strides = array<i32>} : memref<8x32xf32, #tpu.memory_space<vmem>>, vector<8x32xf32>,
    %c1_i32 = arith.constant 1 : i32
    %180 = arith.cmpi eq, %arg1, %c1_i32 : i32
    %181 = arith.extui %180 : i1 to i32
    %c0_i32_74 = arith.constant 0 : i32
    %182 = arith.cmpi ne, %181, %c0_i32_74 : i32
    scf.if %182 {
      %183 = vector.shape_cast %178 : vector<8x32xf32> to vector<1x8x32xf32>
      %c0_75 = arith.constant 0 : index
      %c0_76 = arith.constant 0 : index
      %c0_77 = arith.constant 0 : index
      %184 = vector.load %arg18[%c0_75, %c0_76, %c0_77] : memref<1x8x32xf32, #tpu.memory_space<vmem>>, vector<1x8x32xf32>
      tpu.vector_store %arg18[%c0_75, %c0_76, %c0_77], %183 {strides = array<i32>} : memref<1x8x32xf32, #tpu.memory_space<vmem>>, vector<1x8x32xf32>,
    } else {
    }
    return
  }
  func.func @transform_0(%arg0: i32, %arg1: i32) -> (i32, i32, i32) {
    %c0_i32 = arith.constant 0 : i32
    %c0_i32_0 = arith.constant 0 : i32
    %c0_i32_1 = arith.constant 0 : i32
    return %arg0, %c0_i32, %c0_i32_0 : i32, i32, i32
  }
  func.func @transform_1(%arg0: i32, %arg1: i32) -> (i32, i32) {
    %c0_i32 = arith.constant 0 : i32
    %c0_i32_0 = arith.constant 0 : i32
    %c0_i32_1 = arith.constant 0 : i32
    return %c0_i32, %c0_i32_0 : i32, i32
  }
  func.func @transform_2(%arg0: i32, %arg1: i32) -> (i32, i32) {
    %c0_i32 = arith.constant 0 : i32
    %c0_i32_0 = arith.constant 0 : i32
    %c0_i32_1 = arith.constant 0 : i32
    return %c0_i32, %c0_i32_0 : i32, i32
  }
  func.func @transform_3(%arg0: i32, %arg1: i32) -> (i32, i32) {
    %c0_i32 = arith.constant 0 : i32
    %c0_i32_0 = arith.constant 0 : i32
    %c0_i32_1 = arith.constant 0 : i32
    return %c0_i32, %c0_i32_0 : i32, i32
  }
  func.func @transform_4(%arg0: i32, %arg1: i32) -> (i32, i32, i32) {
    %c0_i32 = arith.constant 0 : i32
    %c0_i32_0 = arith.constant 0 : i32
    %c0_i32_1 = arith.constant 0 : i32
    return %arg1, %c0_i32, %c0_i32_0 : i32, i32, i32
  }
  func.func @transform_5(%arg0: i32, %arg1: i32) -> (i32, i32, i32) {
    %c0_i32 = arith.constant 0 : i32
    %c0_i32_0 = arith.constant 0 : i32
    %c0_i32_1 = arith.constant 0 : i32
    return %arg1, %c0_i32, %c0_i32_0 : i32, i32, i32
  }
  func.func @transform_6(%arg0: i32, %arg1: i32) -> (i32, i32, i32) {
    %c0_i32 = arith.constant 0 : i32
    %c0_i32_0 = arith.constant 0 : i32
    %c0_i32_1 = arith.constant 0 : i32
    return %arg1, %c0_i32, %c0_i32_0 : i32, i32, i32
  }
  func.func @transform_7(%arg0: i32, %arg1: i32) -> (i32, i32, i32) {
    %c0_i32 = arith.constant 0 : i32
    %c0_i32_0 = arith.constant 0 : i32
    %c0_i32_1 = arith.constant 0 : i32
    return %arg1, %c0_i32, %c0_i32_0 : i32, i32, i32
  }
  func.func @transform_8(%arg0: i32, %arg1: i32) -> (i32, i32, i32) {
    %c0_i32 = arith.constant 0 : i32
    %c0_i32_0 = arith.constant 0 : i32
    %c0_i32_1 = arith.constant 0 : i32
    return %arg1, %c0_i32, %c0_i32_0 : i32, i32, i32
  }
  func.func @transform_9(%arg0: i32, %arg1: i32) -> (i32, i32, i32) {
    %c0_i32 = arith.constant 0 : i32
    %c0_i32_0 = arith.constant 0 : i32
    %c0_i32_1 = arith.constant 0 : i32
    return %arg1, %c0_i32, %c0_i32_0 : i32, i32, i32
  }
  func.func @transform_10(%arg0: i32, %arg1: i32) -> (i32, i32, i32) {
    %c0_i32 = arith.constant 0 : i32
    %c0_i32_0 = arith.constant 0 : i32
    %c0_i32_1 = arith.constant 0 : i32
    return %arg1, %c0_i32, %c0_i32_0 : i32, i32, i32
  }
  func.func @transform_11(%arg0: i32, %arg1: i32) -> (i32, i32, i32) {
    %c0_i32 = arith.constant 0 : i32
    %c0_i32_0 = arith.constant 0 : i32
    %c0_i32_1 = arith.constant 0 : i32
    return %arg1, %c0_i32, %c0_i32_0 : i32, i32, i32
  }
  func.func @transform_12(%arg0: i32, %arg1: i32) -> (i32, i32, i32) {
    %c0_i32 = arith.constant 0 : i32
    %c0_i32_0 = arith.constant 0 : i32
    %c0_i32_1 = arith.constant 0 : i32
    return %arg1, %c0_i32, %c0_i32_0 : i32, i32, i32
  }
  func.func @transform_13(%arg0: i32, %arg1: i32) -> (i32, i32, i32) {
    %c0_i32 = arith.constant 0 : i32
    %c0_i32_0 = arith.constant 0 : i32
    %c0_i32_1 = arith.constant 0 : i32
    return %arg1, %c0_i32, %c0_i32_0 : i32, i32, i32
  }
  func.func @transform_14(%arg0: i32, %arg1: i32) -> (i32, i32, i32) {
    %c0_i32 = arith.constant 0 : i32
    %c0_i32_0 = arith.constant 0 : i32
    %c0_i32_1 = arith.constant 0 : i32
    return %arg1, %c0_i32, %c0_i32_0 : i32, i32, i32
  }
  func.func @transform_15(%arg0: i32, %arg1: i32) -> (i32, i32, i32) {
    %c0_i32 = arith.constant 0 : i32
    %c0_i32_0 = arith.constant 0 : i32
    %c0_i32_1 = arith.constant 0 : i32
    return %arg1, %c0_i32, %c0_i32_0 : i32, i32, i32
  }
  func.func @transform_16(%arg0: i32, %arg1: i32) -> (i32, i32, i32) {
    %c0_i32 = arith.constant 0 : i32
    %c0_i32_0 = arith.constant 0 : i32
    %c0_i32_1 = arith.constant 0 : i32
    return %arg0, %c0_i32, %c0_i32_0 : i32, i32, i32
  }
}

</mosaic_0001>

<llo_original>
// kernel: transformer_sequential_learner.1
$region0: #{transformer_sequential_learner.1}
  #allocation0 [shape = 'u32[]', space=smem, size = 0x4, offset = 0x4, fixed_abs, tag = 'smem constant byte address 0x4 - core index']
  #allocation1 [shape = 'u32[72,128]{1,0:T(1,128)}', space=vmem, size = 0x9000, scoped, tag = 'internal scratch']
  #allocation2 [shape = 'f32[8,32]{1,0:T(8,128)}', space=vmem, size = 0x1000, scoped, tag = 'scratch operand']
  %s0 = inlined_call_operand.vmem [shape: f32[2,8,16], index: 0, kind: input, shape index: {}]
  %s1 = inlined_call_operand.vmem [shape: f32[8,32], index: 1, kind: input, shape index: {}]
  %s2 = inlined_call_operand.vmem [shape: bf16[16,32], index: 2, kind: input, shape index: {}]
  %s3 = inlined_call_operand.vmem [shape: f32[1,32], index: 3, kind: input, shape index: {}]
  %s4 = inlined_call_operand.vmem [shape: bf16[2,32,96], index: 4, kind: input, shape index: {}]
  %s5 = inlined_call_operand.vmem [shape: f32[2,1,96], index: 5, kind: input, shape index: {}]
  %s6 = inlined_call_operand.vmem [shape: bf16[2,32,32], index: 6, kind: input, shape index: {}]
  %s7 = inlined_call_operand.vmem [shape: f32[2,1,32], index: 7, kind: input, shape index: {}]
  %s8 = inlined_call_operand.vmem [shape: f32[2,1,32], index: 8, kind: input, shape index: {}]
  %s9 = inlined_call_operand.vmem [shape: f32[2,1,32], index: 9, kind: input, shape index: {}]
  %s10 = inlined_call_operand.vmem [shape: f32[2,1,32], index: 10, kind: input, shape index: {}]
  %s11 = inlined_call_operand.vmem [shape: f32[2,1,32], index: 11, kind: input, shape index: {}]
  %s12 = inlined_call_operand.vmem [shape: bf16[2,32,128], index: 12, kind: input, shape index: {}]
  %s13 = inlined_call_operand.vmem [shape: f32[2,1,128], index: 13, kind: input, shape index: {}]
  %s14 = inlined_call_operand.vmem [shape: bf16[2,128,32], index: 14, kind: input, shape index: {}]
  %s15 = inlined_call_operand.vmem [shape: f32[2,1,32], index: 15, kind: input, shape index: {}]
  %s16 = inlined_call_operand.vmem [shape: f32[2,8,32], index: 16, kind: output, shape index: {}]
  %s17 = sld [smem:[#allocation0]]
  $region105: #{transformer_sequential_learner.1} parent=0
    _
  %s19 = ssub.s32 1, %s17
  %s20 = scalar_select 0, %s19, %s17
  loop: start=0, step=1, limit=6
  $region2: #{transformer_sequential_learner.1} parent=0 // loop_pre_header
    _
  $region3: #{transformer_sequential_learner.1} parent=0 // loop_header
    %s22 = sphi 0, %s26
    %p23 = scmp.ge.s32.totalorder %s22, 6
    %s29 = sphi 0, %s41
    %s30 = sphi 0, %s37
    %s31 = sphi 0, %s29
    %s32 = sphi 0, %s30
    %s33 = sphi 0, %s31
    %s34 = sphi 0, %s32
    %s44 = sphi 0, %s46
    %s47 = sphi 0, %s44
    %s48 = sphi 0, %s47
    %s64 = sphi 0, %s48
    %s68 = sphi 0, %s68
    %s70 = sphi 0, %s68
    %s71 = sphi 0, %s70
    %s85 = sphi 0, %s71
    %s89 = sphi 0, %s89
    %s91 = sphi 0, %s89
    %s92 = sphi 0, %s91
    %s106 = sphi 0, %s92
    %s110 = sphi 0, %s110
    %s112 = sphi 0, %s110
    %s113 = sphi 0, %s112
    %s127 = sphi 0, %s113
    %s133 = sphi 0, %s135
    %s136 = sphi 0, %s133
    %s137 = sphi 0, %s136
    %s153 = sphi 0, %s137
    %s159 = sphi 0, %s161
    %s162 = sphi 0, %s159
    %s163 = sphi 0, %s162
    %s179 = sphi 0, %s163
    %s185 = sphi 0, %s187
    %s188 = sphi 0, %s185
    %s189 = sphi 0, %s188
    %s205 = sphi 0, %s189
    %s211 = sphi 0, %s213
    %s214 = sphi 0, %s211
    %s215 = sphi 0, %s214
    %s231 = sphi 0, %s215
    %s237 = sphi 0, %s239
    %s240 = sphi 0, %s237
    %s241 = sphi 0, %s240
    %s257 = sphi 0, %s241
    %s263 = sphi 0, %s265
    %s266 = sphi 0, %s263
    %s267 = sphi 0, %s266
    %s283 = sphi 0, %s267
    %s289 = sphi 0, %s291
    %s292 = sphi 0, %s289
    %s293 = sphi 0, %s292
    %s309 = sphi 0, %s293
    %s315 = sphi 0, %s317
    %s318 = sphi 0, %s315
    %s319 = sphi 0, %s318
    %s335 = sphi 0, %s319
    %s341 = sphi 0, %s343
    %s344 = sphi 0, %s341
    %s345 = sphi 0, %s344
    %s361 = sphi 0, %s345
    %s367 = sphi 0, %s369
    %s370 = sphi 0, %s367
    %s371 = sphi 0, %s370
    %s387 = sphi 0, %s371
    %s393 = sphi 0, %s395
    %s396 = sphi 0, %s393
    %s397 = sphi 0, %s396
    %s413 = sphi 0, %s397
    %s419 = sphi 0, %s421
    %s422 = sphi 0, %s419
    %s423 = sphi 0, %s422
    %s439 = sphi 0, %s423
    %s445 = sphi 0, %s447
    %s448 = sphi 0, %s445
    %s449 = sphi 0, %s448
    %s465 = sphi 0, %s449
  $region4: #{transformer_sequential_learner.1} parent=0 // loop_header_branch
    %25 = sbr.rel (%p23) target = $region8
  $region5: #{transformer_sequential_learner.1} parent=0 // loop_body
    %s27 = ssub.s32 %s22, 1
    %s28 = ssub.s32 %s22, 2
    %s35 = sadd.s32 1, %s30
    %p36 = scmp.ge.s32.totalorder %s35, 2
    %s37 = scalar_select %p36, 0, %s35
    %s38 = sadd.s32 1, %s29
    %s39 = scalar_select %p36, %s38, %s29
    %p40 = scmp.ge.s32.totalorder %s39, 2
    %s41 = scalar_select %p40, 0, %s39
    %s42 = ssub.s32 %s29, %s41
    %p43 = scmp.eq.s32.totalorder %s42, 0
    %s45 = sadd.s32 %s44, 1
    %s46 = scalar_select %p43, %s44, %s45
    %p49 = pneg %p43
    %p50 = scmp.eq.s32.totalorder %s22, 3
    %p51 = por %p49, %p50
    %p52 = scmp.ne.s32.totalorder %s44, %s47
    %p53 = scmp.eq.s32.totalorder %s22, 0
    %p54 = por %p52, %p53
    %p55 = scmp.ne.s32.totalorder %s44, %s47
    %p56 = scmp.eq.s32.totalorder %s27, 3
    %p57 = por %p55, %p56
    %p58 = scmp.ne.s32.totalorder %s47, %s48
    %p59 = scmp.eq.s32.totalorder %s27, 0
    %p60 = por %p58, %p59
    %p61 = scmp.ne.s32.totalorder %s47, %s48
    %p62 = scmp.eq.s32.totalorder %s28, 3
    %p63 = por %p61, %p62
    %p65 = scmp.ne.s32.totalorder %s48, %s64
    %p66 = scmp.eq.s32.totalorder %s28, 0
    %p67 = por %p65, %p66
    %s69 = sadd.s32 %s68, 1
    %p72 = scmp.eq.s32.totalorder %s22, 3
    %p73 = scmp.ne.s32.totalorder %s68, %s70
    %p74 = scmp.eq.s32.totalorder %s22, 0
    %p75 = por %p73, %p74
    %p76 = scmp.ne.s32.totalorder %s68, %s70
    %p77 = scmp.eq.s32.totalorder %s27, 3
    %p78 = por %p76, %p77
    %p79 = scmp.ne.s32.totalorder %s70, %s71
    %p80 = scmp.eq.s32.totalorder %s27, 0
    %p81 = por %p79, %p80
    %p82 = scmp.ne.s32.totalorder %s70, %s71
    %p83 = scmp.eq.s32.totalorder %s28, 3
    %p84 = por %p82, %p83
    %p86 = scmp.ne.s32.totalorder %s71, %s85
    %p87 = scmp.eq.s32.totalorder %s28, 0
    %p88 = por %p86, %p87
    %s90 = sadd.s32 %s89, 1
    %p93 = scmp.eq.s32.totalorder %s22, 3
    %p94 = scmp.ne.s32.totalorder %s89, %s91
    %p95 = scmp.eq.s32.totalorder %s22, 0
    %p96 = por %p94, %p95
    %p97 = scmp.ne.s32.totalorder %s89, %s91
    %p98 = scmp.eq.s32.totalorder %s27, 3
    %p99 = por %p97, %p98
    %p100 = scmp.ne.s32.totalorder %s91, %s92
    %p101 = scmp.eq.s32.totalorder %s27, 0
    %p102 = por %p100, %p101
    %p103 = scmp.ne.s32.totalorder %s91, %s92
    %p104 = scmp.eq.s32.totalorder %s28, 3
    %p105 = por %p103, %p104
    %p107 = scmp.ne.s32.totalorder %s92, %s106
    %p108 = scmp.eq.s32.totalorder %s28, 0
    %p109 = por %p107, %p108
    %s111 = sadd.s32 %s110, 1
    %p114 = scmp.eq.s32.totalorder %s22, 3
    %p115 = scmp.ne.s32.totalorder %s110, %s112
    %p116 = scmp.eq.s32.totalorder %s22, 0
    %p117 = por %p115, %p116
    %p118 = scmp.ne.s32.totalorder %s110, %s112
    %p119 = scmp.eq.s32.totalorder %s27, 3
    %p120 = por %p118, %p119
    %p121 = scmp.ne.s32.totalorder %s112, %s113
    %p122 = scmp.eq.s32.totalorder %s27, 0
    %p123 = por %p121, %p122
    %p124 = scmp.ne.s32.totalorder %s112, %s113
    %p125 = scmp.eq.s32.totalorder %s28, 3
    %p126 = por %p124, %p125
    %p128 = scmp.ne.s32.totalorder %s113, %s127
    %p129 = scmp.eq.s32.totalorder %s28, 0
    %p130 = por %p128, %p129
    %s131 = ssub.s32 %s30, %s37
    %p132 = scmp.eq.s32.totalorder %s131, 0
    %s134 = sadd.s32 %s133, 1
    %s135 = scalar_select %p132, %s133, %s134
    %p138 = pneg %p132
    %p139 = scmp.eq.s32.totalorder %s22, 3
    %p140 = por %p138, %p139
    %p141 = scmp.ne.s32.totalorder %s133, %s136
    %p142 = scmp.eq.s32.totalorder %s22, 0
    %p143 = por %p141, %p142
    %p144 = scmp.ne.s32.totalorder %s133, %s136
    %p145 = scmp.eq.s32.totalorder %s27, 3
    %p146 = por %p144, %p145
    %p147 = scmp.ne.s32.totalorder %s136, %s137
    %p148 = scmp.eq.s32.totalorder %s27, 0
    %p149 = por %p147, %p148
    %p150 = scmp.ne.s32.totalorder %s136, %s137
    %p151 = scmp.eq.s32.totalorder %s28, 3
    %p152 = por %p150, %p151
    %p154 = scmp.ne.s32.totalorder %s137, %s153
    %p155 = scmp.eq.s32.totalorder %s28, 0
    %p156 = por %p154, %p155
    %s157 = ssub.s32 %s30, %s37
    %p158 = scmp.eq.s32.totalorder %s157, 0
    %s160 = sadd.s32 %s159, 1
    %s161 = scalar_select %p158, %s159, %s160
    %p164 = pneg %p158
    %p165 = scmp.eq.s32.totalorder %s22, 3
    %p166 = por %p164, %p165
    %p167 = scmp.ne.s32.totalorder %s159, %s162
    %p168 = scmp.eq.s32.totalorder %s22, 0
    %p169 = por %p167, %p168
    %p170 = scmp.ne.s32.totalorder %s159, %s162
    %p171 = scmp.eq.s32.totalorder %s27, 3
    %p172 = por %p170, %p171
    %p173 = scmp.ne.s32.totalorder %s162, %s163
    %p174 = scmp.eq.s32.totalorder %s27, 0
    %p175 = por %p173, %p174
    %p176 = scmp.ne.s32.totalorder %s162, %s163
    %p177 = scmp.eq.s32.totalorder %s28, 3
    %p178 = por %p176, %p177
    %p180 = scmp.ne.s32.totalorder %s163, %s179
    %p181 = scmp.eq.s32.totalorder %s28, 0
    %p182 = por %p180, %p181
    %s183 = ssub.s32 %s30, %s37
    %p184 = scmp.eq.s32.totalorder %s183, 0
    %s186 = sadd.s32 %s185, 1
    %s187 = scalar_select %p184, %s185, %s186
    %p190 = pneg %p184
    %p191 = scmp.eq.s32.totalorder %s22, 3
    %p192 = por %p190, %p191
    %p193 = scmp.ne.s32.totalorder %s185, %s188
    %p194 = scmp.eq.s32.totalorder %s22, 0
    %p195 = por %p193, %p194
    %p196 = scmp.ne.s32.totalorder %s185, %s188
    %p197 = scmp.eq.s32.totalorder %s27, 3
    %p198 = por %p196, %p197
    %p199 = scmp.ne.s32.totalorder %s188, %s189
    %p200 = scmp.eq.s32.totalorder %s27, 0
    %p201 = por %p199, %p200
    %p202 = scmp.ne.s32.totalorder %s188, %s189
    %p203 = scmp.eq.s32.totalorder %s28, 3
    %p204 = por %p202, %p203
    %p206 = scmp.ne.s32.totalorder %s189, %s205
    %p207 = scmp.eq.s32.totalorder %s28, 0
    %p208 = por %p206, %p207
    %s209 = ssub.s32 %s30, %s37
    %p210 = scmp.eq.s32.totalorder %s209, 0
    %s212 = sadd.s32 %s211, 1
    %s213 = scalar_select %p210, %s211, %s212
    %p216 = pneg %p210
    %p217 = scmp.eq.s32.totalorder %s22, 3
    %p218 = por %p216, %p217
    %p219 = scmp.ne.s32.totalorder %s211, %s214
    %p220 = scmp.eq.s32.totalorder %s22, 0
    %p221 = por %p219, %p220
    %p222 = scmp.ne.s32.totalorder %s211, %s214
    %p223 = scmp.eq.s32.totalorder %s27, 3
    %p224 = por %p222, %p223
    %p225 = scmp.ne.s32.totalorder %s214, %s215
    %p226 = scmp.eq.s32.totalorder %s27, 0
    %p227 = por %p225, %p226
    %p228 = scmp.ne.s32.totalorder %s214, %s215
    %p229 = scmp.eq.s32.totalorder %s28, 3
    %p230 = por %p228, %p229
    %p232 = scmp.ne.s32.totalorder %s215, %s231
    %p233 = scmp.eq.s32.totalorder %s28, 0
    %p234 = por %p232, %p233
    %s235 = ssub.s32 %s30, %s37
    %p236 = scmp.eq.s32.totalorder %s235, 0
    %s238 = sadd.s32 %s237, 1
    %s239 = scalar_select %p236, %s237, %s238
    %p242 = pneg %p236
    %p243 = scmp.eq.s32.totalorder %s22, 3
    %p244 = por %p242, %p243
    %p245 = scmp.ne.s32.totalorder %s237, %s240
    %p246 = scmp.eq.s32.totalorder %s22, 0
    %p247 = por %p245, %p246
    %p248 = scmp.ne.s32.totalorder %s237, %s240
    %p249 = scmp.eq.s32.totalorder %s27, 3
    %p250 = por %p248, %p249
    %p251 = scmp.ne.s32.totalorder %s240, %s241
    %p252 = scmp.eq.s32.totalorder %s27, 0
    %p253 = por %p251, %p252
    %p254 = scmp.ne.s32.totalorder %s240, %s241
    %p255 = scmp.eq.s32.totalorder %s28, 3
    %p256 = por %p254, %p255
    %p258 = scmp.ne.s32.totalorder %s241, %s257
    %p259 = scmp.eq.s32.totalorder %s28, 0
    %p260 = por %p258, %p259
    %s261 = ssub.s32 %s30, %s37
    %p262 = scmp.eq.s32.totalorder %s261, 0
    %s264 = sadd.s32 %s263, 1
    %s265 = scalar_select %p262, %s263, %s264
    %p268 = pneg %p262
    %p269 = scmp.eq.s32.totalorder %s22, 3
    %p270 = por %p268, %p269
    %p271 = scmp.ne.s32.totalorder %s263, %s266
    %p272 = scmp.eq.s32.totalorder %s22, 0
    %p273 = por %p271, %p272
    %p274 = scmp.ne.s32.totalorder %s263, %s266
    %p275 = scmp.eq.s32.totalorder %s27, 3
    %p276 = por %p274, %p275
    %p277 = scmp.ne.s32.totalorder %s266, %s267
    %p278 = scmp.eq.s32.totalorder %s27, 0
    %p279 = por %p277, %p278
    %p280 = scmp.ne.s32.totalorder %s266, %s267
    %p281 = scmp.eq.s32.totalorder %s28, 3
    %p282 = por %p280, %p281
    %p284 = scmp.ne.s32.totalorder %s267, %s283
    %p285 = scmp.eq.s32.totalorder %s28, 0
    %p286 = por %p284, %p285
    %s287 = ssub.s32 %s30, %s37
    %p288 = scmp.eq.s32.totalorder %s287, 0
    %s290 = sadd.s32 %s289, 1
    %s291 = scalar_select %p288, %s289, %s290
    %p294 = pneg %p288
    %p295 = scmp.eq.s32.totalorder %s22, 3
    %p296 = por %p294, %p295
    %p297 = scmp.ne.s32.totalorder %s289, %s292
    %p298 = scmp.eq.s32.totalorder %s22, 0
    %p299 = por %p297, %p298
    %p300 = scmp.ne.s32.totalorder %s289, %s292
    %p301 = scmp.eq.s32.totalorder %s27, 3
    %p302 = por %p300, %p301
    %p303 = scmp.ne.s32.totalorder %s292, %s293
    %p304 = scmp.eq.s32.totalorder %s27, 0
    %p305 = por %p303, %p304
    %p306 = scmp.ne.s32.totalorder %s292, %s293
    %p307 = scmp.eq.s32.totalorder %s28, 3
    %p308 = por %p306, %p307
    %p310 = scmp.ne.s32.totalorder %s293, %s309
    %p311 = scmp.eq.s32.totalorder %s28, 0
    %p312 = por %p310, %p311
    %s313 = ssub.s32 %s30, %s37
    %p314 = scmp.eq.s32.totalorder %s313, 0
    %s316 = sadd.s32 %s315, 1
    %s317 = scalar_select %p314, %s315, %s316
    %p320 = pneg %p314
    %p321 = scmp.eq.s32.totalorder %s22, 3
    %p322 = por %p320, %p321
    %p323 = scmp.ne.s32.totalorder %s315, %s318
    %p324 = scmp.eq.s32.totalorder %s22, 0
    %p325 = por %p323, %p324
    %p326 = scmp.ne.s32.totalorder %s315, %s318
    %p327 = scmp.eq.s32.totalorder %s27, 3
    %p328 = por %p326, %p327
    %p329 = scmp.ne.s32.totalorder %s318, %s319
    %p330 = scmp.eq.s32.totalorder %s27, 0
    %p331 = por %p329, %p330
    %p332 = scmp.ne.s32.totalorder %s318, %s319
    %p333 = scmp.eq.s32.totalorder %s28, 3
    %p334 = por %p332, %p333
    %p336 = scmp.ne.s32.totalorder %s319, %s335
    %p337 = scmp.eq.s32.totalorder %s28, 0
    %p338 = por %p336, %p337
    %s339 = ssub.s32 %s30, %s37
    %p340 = scmp.eq.s32.totalorder %s339, 0
    %s342 = sadd.s32 %s341, 1
    %s343 = scalar_select %p340, %s341, %s342
    %p346 = pneg %p340
    %p347 = scmp.eq.s32.totalorder %s22, 3
    %p348 = por %p346, %p347
    %p349 = scmp.ne.s32.totalorder %s341, %s344
    %p350 = scmp.eq.s32.totalorder %s22, 0
    %p351 = por %p349, %p350
    %p352 = scmp.ne.s32.totalorder %s341, %s344
    %p353 = scmp.eq.s32.totalorder %s27, 3
    %p354 = por %p352, %p353
    %p355 = scmp.ne.s32.totalorder %s344, %s345
    %p356 = scmp.eq.s32.totalorder %s27, 0
    %p357 = por %p355, %p356
    %p358 = scmp.ne.s32.totalorder %s344, %s345
    %p359 = scmp.eq.s32.totalorder %s28, 3
    %p360 = por %p358, %p359
    %p362 = scmp.ne.s32.totalorder %s345, %s361
    %p363 = scmp.eq.s32.totalorder %s28, 0
    %p364 = por %p362, %p363
    %s365 = ssub.s32 %s30, %s37
    %p366 = scmp.eq.s32.totalorder %s365, 0
    %s368 = sadd.s32 %s367, 1
    %s369 = scalar_select %p366, %s367, %s368
    %p372 = pneg %p366
    %p373 = scmp.eq.s32.totalorder %s22, 3
    %p374 = por %p372, %p373
    %p375 = scmp.ne.s32.totalorder %s367, %s370
    %p376 = scmp.eq.s32.totalorder %s22, 0
    %p377 = por %p375, %p376
    %p378 = scmp.ne.s32.totalorder %s367, %s370
    %p379 = scmp.eq.s32.totalorder %s27, 3
    %p380 = por %p378, %p379
    %p381 = scmp.ne.s32.totalorder %s370, %s371
    %p382 = scmp.eq.s32.totalorder %s27, 0
    %p383 = por %p381, %p382
    %p384 = scmp.ne.s32.totalorder %s370, %s371
    %p385 = scmp.eq.s32.totalorder %s28, 3
    %p386 = por %p384, %p385
    %p388 = scmp.ne.s32.totalorder %s371, %s387
    %p389 = scmp.eq.s32.totalorder %s28, 0
    %p390 = por %p388, %p389
    %s391 = ssub.s32 %s30, %s37
    %p392 = scmp.eq.s32.totalorder %s391, 0
    %s394 = sadd.s32 %s393, 1
    %s395 = scalar_select %p392, %s393, %s394
    %p398 = pneg %p392
    %p399 = scmp.eq.s32.totalorder %s22, 3
    %p400 = por %p398, %p399
    %p401 = scmp.ne.s32.totalorder %s393, %s396
    %p402 = scmp.eq.s32.totalorder %s22, 0
    %p403 = por %p401, %p402
    %p404 = scmp.ne.s32.totalorder %s393, %s396
    %p405 = scmp.eq.s32.totalorder %s27, 3
    %p406 = por %p404, %p405
    %p407 = scmp.ne.s32.totalorder %s396, %s397
    %p408 = scmp.eq.s32.totalorder %s27, 0
    %p409 = por %p407, %p408
    %p410 = scmp.ne.s32.totalorder %s396, %s397
    %p411 = scmp.eq.s32.totalorder %s28, 3
    %p412 = por %p410, %p411
    %p414 = scmp.ne.s32.totalorder %s397, %s413
    %p415 = scmp.eq.s32.totalorder %s28, 0
    %p416 = por %p414, %p415
    %s417 = ssub.s32 %s30, %s37
    %p418 = scmp.eq.s32.totalorder %s417, 0
    %s420 = sadd.s32 %s419, 1
    %s421 = scalar_select %p418, %s419, %s420
    %p424 = pneg %p418
    %p425 = scmp.eq.s32.totalorder %s22, 3
    %p426 = por %p424, %p425
    %p427 = scmp.ne.s32.totalorder %s419, %s422
    %p428 = scmp.eq.s32.totalorder %s22, 0
    %p429 = por %p427, %p428
    %p430 = scmp.ne.s32.totalorder %s419, %s422
    %p431 = scmp.eq.s32.totalorder %s27, 3
    %p432 = por %p430, %p431
    %p433 = scmp.ne.s32.totalorder %s422, %s423
    %p434 = scmp.eq.s32.totalorder %s27, 0
    %p435 = por %p433, %p434
    %p436 = scmp.ne.s32.totalorder %s422, %s423
    %p437 = scmp.eq.s32.totalorder %s28, 3
    %p438 = por %p436, %p437
    %p440 = scmp.ne.s32.totalorder %s423, %s439
    %p441 = scmp.eq.s32.totalorder %s28, 0
    %p442 = por %p440, %p441
    %s443 = ssub.s32 %s29, %s41
    %p444 = scmp.eq.s32.totalorder %s443, 0
    %s446 = sadd.s32 %s445, 1
    %s447 = scalar_select %p444, %s445, %s446
    %p450 = pneg %p444
    %p451 = scmp.eq.s32.totalorder %s22, 3
    %p452 = por %p450, %p451
    %p453 = scmp.ne.s32.totalorder %s445, %s448
    %p454 = scmp.eq.s32.totalorder %s22, 0
    %p455 = por %p453, %p454
    %p456 = scmp.ne.s32.totalorder %s445, %s448
    %p457 = scmp.eq.s32.totalorder %s27, 3
    %p458 = por %p456, %p457
    %p459 = scmp.ne.s32.totalorder %s448, %s449
    %p460 = scmp.eq.s32.totalorder %s27, 0
    %p461 = por %p459, %p460
    %p462 = scmp.ne.s32.totalorder %s448, %s449
    %p463 = scmp.eq.s32.totalorder %s28, 3
    %p464 = por %p462, %p463
    %p466 = scmp.ne.s32.totalorder %s449, %s465
    %p467 = scmp.eq.s32.totalorder %s28, 0
    %p468 = por %p466, %p467
    %p469 = scmp.le.s32.totalorder 1, %s22
    %p470 = scmp.lt.s32.totalorder %s22, 5
    %p471 = pnand %p469, %p470
    %p472 = pneg %p471
    // Predicated region
    $region9: #{transformer_sequential_learner.1} parent=5 // pred_check
      _
    $region10: #{transformer_sequential_learner.1} parent=5 // pred_check_branch
      %474 = sbr.rel (%p471) target = $region12
    $region11: #{transformer_sequential_learner.1} parent=5 // pred_region
      %s475 = ssub.s32 %s22, 1
      // Predicated region
      $region13: #{transformer_sequential_learner.1} parent=11 // pred_check
        %p476 = pneg %p81
      $region14: #{transformer_sequential_learner.1} parent=11 // pred_check_branch
        %478 = sbr.rel (%p476) target = $region16
      $region15: #{transformer_sequential_learner.1} parent=11 // pred_region
        _
      $region16: #{transformer_sequential_learner.1} parent=11 // pred_fallthru
        _
      // Predicated region
      $region17: #{transformer_sequential_learner.1} parent=11 // pred_check
        %p479 = pneg %p102
      $region18: #{transformer_sequential_learner.1} parent=11 // pred_check_branch
        %481 = sbr.rel (%p479) target = $region20
      $region19: #{transformer_sequential_learner.1} parent=11 // pred_region
        _
      $region20: #{transformer_sequential_learner.1} parent=11 // pred_fallthru
        _
      // Predicated region
      $region21: #{transformer_sequential_learner.1} parent=11 // pred_check
        %p482 = pneg %p123
      $region22: #{transformer_sequential_learner.1} parent=11 // pred_check_branch
        %484 = sbr.rel (%p482) target = $region24
      $region23: #{transformer_sequential_learner.1} parent=11 // pred_region
        _
      $region24: #{transformer_sequential_learner.1} parent=11 // pred_fallthru
        _
    $region12: #{transformer_sequential_learner.1} parent=5 // pred_fallthru
      _
    %p485 = scmp.lt.s32.totalorder %s22, 4
    // Predicated region
    $region25: #{transformer_sequential_learner.1} parent=5 // pred_check
      %p486 = pneg %p485
    $region26: #{transformer_sequential_learner.1} parent=5 // pred_check_branch
      %488 = sbr.rel (%p486) target = $region28
    $region27: #{transformer_sequential_learner.1} parent=5 // pred_region
      // Predicated region
      $region29: #{transformer_sequential_learner.1} parent=27 // pred_check
        %p489 = pneg %p54
      $region30: #{transformer_sequential_learner.1} parent=27 // pred_check_branch
        %491 = sbr.rel (%p489) target = $region32
      $region31: #{transformer_sequential_learner.1} parent=27 // pred_region
        %p492 = scmp.lt.s32.totalorder %s29, 1
        %s493 = scalar_select %p492, %s29, 1
        %s494 = smul.addr %s493, 8
        %s495 = scalar_lea.vmem %s0, %s494
      $region32: #{transformer_sequential_learner.1} parent=27 // pred_fallthru
        _
      // Predicated region
      $region33: #{transformer_sequential_learner.1} parent=27 // pred_check
        %p496 = pneg %p143
      $region34: #{transformer_sequential_learner.1} parent=27 // pred_check_branch
        %498 = sbr.rel (%p496) target = $region36
      $region35: #{transformer_sequential_learner.1} parent=27 // pred_region
        %p499 = scmp.lt.s32.totalorder %s30, 1
        %s500 = scalar_select %p499, %s30, 1
        %s501 = smul.addr %s500, 4
        %s502 = smul.addr %s501, 4
        %s503 = scalar_lea.vmem %s4, %s502
      $region36: #{transformer_sequential_learner.1} parent=27 // pred_fallthru
        _
      // Predicated region
      $region37: #{transformer_sequential_learner.1} parent=27 // pred_check
        %p504 = pneg %p169
      $region38: #{transformer_sequential_learner.1} parent=27 // pred_check_branch
        %506 = sbr.rel (%p504) target = $region40
      $region39: #{transformer_sequential_learner.1} parent=27 // pred_region
        %p507 = scmp.lt.s32.totalorder %s30, 1
        %s508 = scalar_select %p507, %s30, 1
        %s509 = scalar_lea.vmem %s5, %s508
      $region40: #{transformer_sequential_learner.1} parent=27 // pred_fallthru
        _
      // Predicated region
      $region41: #{transformer_sequential_learner.1} parent=27 // pred_check
        %p510 = pneg %p195
      $region42: #{transformer_sequential_learner.1} parent=27 // pred_check_branch
        %512 = sbr.rel (%p510) target = $region44
      $region43: #{transformer_sequential_learner.1} parent=27 // pred_region
        %p513 = scmp.lt.s32.totalorder %s30, 1
        %s514 = scalar_select %p513, %s30, 1
        %s515 = smul.addr %s514, 4
        %s516 = smul.addr %s515, 4
        %s517 = scalar_lea.vmem %s6, %s516
      $region44: #{transformer_sequential_learner.1} parent=27 // pred_fallthru
        _
      // Predicated region
      $region45: #{transformer_sequential_learner.1} parent=27 // pred_check
        %p518 = pneg %p221
      $region46: #{transformer_sequential_learner.1} parent=27 // pred_check_branch
        %520 = sbr.rel (%p518) target = $region48
      $region47: #{transformer_sequential_learner.1} parent=27 // pred_region
        %p521 = scmp.lt.s32.totalorder %s30, 1
        %s522 = scalar_select %p521, %s30, 1
        %s523 = scalar_lea.vmem %s7, %s522
      $region48: #{transformer_sequential_learner.1} parent=27 // pred_fallthru
        _
      // Predicated region
      $region49: #{transformer_sequential_learner.1} parent=27 // pred_check
        %p524 = pneg %p247
      $region50: #{transformer_sequential_learner.1} parent=27 // pred_check_branch
        %526 = sbr.rel (%p524) target = $region52
      $region51: #{transformer_sequential_learner.1} parent=27 // pred_region
        %p527 = scmp.lt.s32.totalorder %s30, 1
        %s528 = scalar_select %p527, %s30, 1
        %s529 = scalar_lea.vmem %s8, %s528
      $region52: #{transformer_sequential_learner.1} parent=27 // pred_fallthru
        _
      // Predicated region
      $region53: #{transformer_sequential_learner.1} parent=27 // pred_check
        %p530 = pneg %p273
      $region54: #{transformer_sequential_learner.1} parent=27 // pred_check_branch
        %532 = sbr.rel (%p530) target = $region56
      $region55: #{transformer_sequential_learner.1} parent=27 // pred_region
        %p533 = scmp.lt.s32.totalorder %s30, 1
        %s534 = scalar_select %p533, %s30, 1
        %s535 = scalar_lea.vmem %s9, %s534
      $region56: #{transformer_sequential_learner.1} parent=27 // pred_fallthru
        _
      // Predicated region
      $region57: #{transformer_sequential_learner.1} parent=27 // pred_check
        %p536 = pneg %p299
      $region58: #{transformer_sequential_learner.1} parent=27 // pred_check_branch
        %538 = sbr.rel (%p536) target = $region60
      $region59: #{transformer_sequential_learner.1} parent=27 // pred_region
        %p539 = scmp.lt.s32.totalorder %s30, 1
        %s540 = scalar_select %p539, %s30, 1
        %s541 = scalar_lea.vmem %s10, %s540
      $region60: #{transformer_sequential_learner.1} parent=27 // pred_fallthru
        _
      // Predicated region
      $region61: #{transformer_sequential_learner.1} parent=27 // pred_check
        %p542 = pneg %p325
      $region62: #{transformer_sequential_learner.1} parent=27 // pred_check_branch
        %544 = sbr.rel (%p542) target = $region64
      $region63: #{transformer_sequential_learner.1} parent=27 // pred_region
        %p545 = scmp.lt.s32.totalorder %s30, 1
        %s546 = scalar_select %p545, %s30, 1
        %s547 = scalar_lea.vmem %s11, %s546
      $region64: #{transformer_sequential_learner.1} parent=27 // pred_fallthru
        _
      // Predicated region
      $region65: #{transformer_sequential_learner.1} parent=27 // pred_check
        %p548 = pneg %p351
      $region66: #{transformer_sequential_learner.1} parent=27 // pred_check_branch
        %550 = sbr.rel (%p548) target = $region68
      $region67: #{transformer_sequential_learner.1} parent=27 // pred_region
        %p551 = scmp.lt.s32.totalorder %s30, 1
        %s552 = scalar_select %p551, %s30, 1
        %s553 = smul.addr %s552, 4
        %s554 = smul.addr %s553, 4
        %s555 = scalar_lea.vmem %s12, %s554
      $region68: #{transformer_sequential_learner.1} parent=27 // pred_fallthru
        _
      // Predicated region
      $region69: #{transformer_sequential_learner.1} parent=27 // pred_check
        %p556 = pneg %p377
      $region70: #{transformer_sequential_learner.1} parent=27 // pred_check_branch
        %558 = sbr.rel (%p556) target = $region72
      $region71: #{transformer_sequential_learner.1} parent=27 // pred_region
        %p559 = scmp.lt.s32.totalorder %s30, 1
        %s560 = scalar_select %p559, %s30, 1
        %s561 = scalar_lea.vmem %s13, %s560
      $region72: #{transformer_sequential_learner.1} parent=27 // pred_fallthru
        _
      // Predicated region
      $region73: #{transformer_sequential_learner.1} parent=27 // pred_check
        %p562 = pneg %p403
      $region74: #{transformer_sequential_learner.1} parent=27 // pred_check_branch
        %564 = sbr.rel (%p562) target = $region76
      $region75: #{transformer_sequential_learner.1} parent=27 // pred_region
        %p565 = scmp.lt.s32.totalorder %s30, 1
        %s566 = scalar_select %p565, %s30, 1
        %s567 = smul.addr %s566, 16
        %s568 = smul.addr %s567, 4
        %s569 = scalar_lea.vmem %s14, %s568
      $region76: #{transformer_sequential_learner.1} parent=27 // pred_fallthru
        _
      // Predicated region
      $region77: #{transformer_sequential_learner.1} parent=27 // pred_check
        %p570 = pneg %p429
      $region78: #{transformer_sequential_learner.1} parent=27 // pred_check_branch
        %572 = sbr.rel (%p570) target = $region80
      $region79: #{transformer_sequential_learner.1} parent=27 // pred_region
        %p573 = scmp.lt.s32.totalorder %s30, 1
        %s574 = scalar_select %p573, %s30, 1
        %s575 = scalar_lea.vmem %s15, %s574
      $region80: #{transformer_sequential_learner.1} parent=27 // pred_fallthru
        _
    $region28: #{transformer_sequential_learner.1} parent=5 // pred_fallthru
      _
    %p576 = scmp.le.s32.totalorder 1, %s22
    %p577 = scmp.lt.s32.totalorder %s22, 5
    %p578 = pnand %p576, %p577
    %p579 = pneg %p578
    // Predicated region
    $region81: #{transformer_sequential_learner.1} parent=5 // pred_check
      _
    $region82: #{transformer_sequential_learner.1} parent=5 // pred_check_branch
      %581 = sbr.rel (%p578) target = $region84
    $region83: #{transformer_sequential_learner.1} parent=5 // pred_region
      %s582 = ssub.s32 %s22, 1
      %p583 = scmp.lt.s32.totalorder %s31, 1
      %s584 = scalar_select %p583, %s31, 1
      %s585 = smul.addr %s584, 8
      %s586 = scalar_lea.vmem %s0, %s585
      %p587 = pneg %p60
      %p588 = pneg %p57
      %p589 = pneg %p81
      %p590 = pneg %p78
      %p591 = pneg %p102
      %p592 = pneg %p99
      %p593 = pneg %p123
      %p594 = pneg %p120
      %p595 = scmp.lt.s32.totalorder %s32, 1
      %s596 = scalar_select %p595, %s32, 1
      %s597 = smul.addr %s596, 4
      %s598 = smul.addr %s597, 4
      %s599 = scalar_lea.vmem %s4, %s598
      %p600 = pneg %p149
      %p601 = pneg %p146
      %p602 = scmp.lt.s32.totalorder %s32, 1
      %s603 = scalar_select %p602, %s32, 1
      %s604 = scalar_lea.vmem %s5, %s603
      %p605 = pneg %p175
      %p606 = pneg %p172
      %p607 = scmp.lt.s32.totalorder %s32, 1
      %s608 = scalar_select %p607, %s32, 1
      %s609 = smul.addr %s608, 4
      %s610 = smul.addr %s609, 4
      %s611 = scalar_lea.vmem %s6, %s610
      %p612 = pneg %p201
      %p613 = pneg %p198
      %p614 = scmp.lt.s32.totalorder %s32, 1
      %s615 = scalar_select %p614, %s32, 1
      %s616 = scalar_lea.vmem %s7, %s615
      %p617 = pneg %p227
      %p618 = pneg %p224
      %p619 = scmp.lt.s32.totalorder %s32, 1
      %s620 = scalar_select %p619, %s32, 1
      %s621 = scalar_lea.vmem %s8, %s620
      %p622 = pneg %p253
      %p623 = pneg %p250
      %p624 = scmp.lt.s32.totalorder %s32, 1
      %s625 = scalar_select %p624, %s32, 1
      %s626 = scalar_lea.vmem %s9, %s625
      %p627 = pneg %p279
      %p628 = pneg %p276
      %p629 = scmp.lt.s32.totalorder %s32, 1
      %s630 = scalar_select %p629, %s32, 1
      %s631 = scalar_lea.vmem %s10, %s630
      %p632 = pneg %p305
      %p633 = pneg %p302
      %p634 = scmp.lt.s32.totalorder %s32, 1
      %s635 = scalar_select %p634, %s32, 1
      %s636 = scalar_lea.vmem %s11, %s635
      %p637 = pneg %p331
      %p638 = pneg %p328
      %p639 = scmp.lt.s32.totalorder %s32, 1
      %s640 = scalar_select %p639, %s32, 1
      %s641 = smul.addr %s640, 4
      %s642 = smul.addr %s641, 4
      %s643 = scalar_lea.vmem %s12, %s642
      %p644 = pneg %p357
      %p645 = pneg %p354
      %p646 = scmp.lt.s32.totalorder %s32, 1
      %s647 = scalar_select %p646, %s32, 1
      %s648 = scalar_lea.vmem %s13, %s647
      %p649 = pneg %p383
      %p650 = pneg %p380
      %p651 = scmp.lt.s32.totalorder %s32, 1
      %s652 = scalar_select %p651, %s32, 1
      %s653 = smul.addr %s652, 16
      %s654 = smul.addr %s653, 4
      %s655 = scalar_lea.vmem %s14, %s654
      %p656 = pneg %p409
      %p657 = pneg %p406
      %p658 = scmp.lt.s32.totalorder %s32, 1
      %s659 = scalar_select %p658, %s32, 1
      %s660 = scalar_lea.vmem %s15, %s659
      %p661 = pneg %p435
      %p662 = pneg %p432
      %p663 = pneg %p461
      %p664 = pneg %p458
      %p665 = scmp.lt.s32.totalorder %s31, 1
      %s666 = scalar_select %p665, %s31, 1
      %s667 = smul.addr %s666, 8
      %s668 = scalar_lea.vmem %s16, %s667
      %p669 = scmp.lt.s32.totalorder %s31, 1
      %s670 = scalar_select %p669, %s31, 1
      %s671 = smul.addr %s670, 8
      %s672 = scalar_lea.vmem %s0, %s671
      %p673 = scmp.lt.s32.totalorder %s32, 1
      %s674 = scalar_select %p673, %s32, 1
      %s675 = smul.addr %s674, 4
      %s676 = smul.addr %s675, 4
      %s677 = scalar_lea.vmem %s4, %s676
      %p678 = scmp.lt.s32.totalorder %s32, 1
      %s679 = scalar_select %p678, %s32, 1
      %s680 = scalar_lea.vmem %s5, %s679
      %p681 = scmp.lt.s32.totalorder %s32, 1
      %s682 = scalar_select %p681, %s32, 1
      %s683 = smul.addr %s682, 4
      %s684 = smul.addr %s683, 4
      %s685 = scalar_lea.vmem %s6, %s684
      %p686 = scmp.lt.s32.totalorder %s32, 1
      %s687 = scalar_select %p686, %s32, 1
      %s688 = scalar_lea.vmem %s7, %s687
      %p689 = scmp.lt.s32.totalorder %s32, 1
      %s690 = scalar_select %p689, %s32, 1
      %s691 = scalar_lea.vmem %s8, %s690
      %p692 = scmp.lt.s32.totalorder %s32, 1
      %s693 = scalar_select %p692, %s32, 1
      %s694 = scalar_lea.vmem %s9, %s693
      %p695 = scmp.lt.s32.totalorder %s32, 1
      %s696 = scalar_select %p695, %s32, 1
      %s697 = scalar_lea.vmem %s10, %s696
      %p698 = scmp.lt.s32.totalorder %s32, 1
      %s699 = scalar_select %p698, %s32, 1
      %s700 = scalar_lea.vmem %s11, %s699
      %p701 = scmp.lt.s32.totalorder %s32, 1
      %s702 = scalar_select %p701, %s32, 1
      %s703 = smul.addr %s702, 4
      %s704 = smul.addr %s703, 4
      %s705 = scalar_lea.vmem %s12, %s704
      %p706 = scmp.lt.s32.totalorder %s32, 1
      %s707 = scalar_select %p706, %s32, 1
      %s708 = scalar_lea.vmem %s13, %s707
      %p709 = scmp.lt.s32.totalorder %s32, 1
      %s710 = scalar_select %p709, %s32, 1
      %s711 = smul.addr %s710, 16
      %s712 = smul.addr %s711, 4
      %s713 = scalar_lea.vmem %s14, %s712
      %p714 = scmp.lt.s32.totalorder %s32, 1
      %s715 = scalar_select %p714, %s32, 1
      %s716 = scalar_lea.vmem %s15, %s715
      %p717 = scmp.lt.s32.totalorder %s31, 1
      %s718 = scalar_select %p717, %s31, 1
      %s719 = smul.addr %s718, 8
      %s720 = scalar_lea.vmem %s16, %s719
      %p722 = scmp.eq.s32.totalorder %s32, 0
      // Predicated region
      $region85: #{transformer_sequential_learner.1} parent=83 // pred_check
        %p723 = pneg %p722
      $region86: #{transformer_sequential_learner.1} parent=83 // pred_check_branch
        %725 = sbr.rel (%p723) target = $region88
      $region87: #{transformer_sequential_learner.1} parent=83 // pred_region
        %v726 = vld [vmem:[%s672] sm:$0xff]
        %v727 = vpack.c.bf16 %v726, %v726
        %v728 = vld [vmem:[%s2] sm:$0xf]
        %v729 = vld [vmem:[%s2 + $0x4] sm:$0xf]
        %v732 = vunpack.c.l.b16 %v728
        %v733 = vunpack.c.l.b16 %v729
        %v734 = vpack.c.b16 %v733, %v732
        %vm736 = vcmask 130048
        %v738 = vsel %vm736, %v727, 0
        %740 = vmatpush.bf16.msra.mxu0 0
        %741 = vmatpush.bf16.msra.mxu0 0
        %742 = vmatpush.bf16.msra.mxu0 0
        %743 = vmatpush.bf16.msra.mxu0 0
        %744 = vmatpush.bf16.msra.mxu0 0
        %745 = vmatpush.bf16.msra.mxu0 0
        %746 = vmatpush.bf16.msra.mxu0 0
        %747 = vmatpush.bf16.msra.mxu0 %v734
        %748 = vmatmul.bf16.gmra.mxu0 %v738
        %v749 = vpop.f32.mrf.mxu0
        %v750 = vadd.f32 0.0, %v749
        %v751 = vpop.f32.mrf.mxu0
        %752 = vdwg.mxu0
        %v753 = vld [vmem:[%s3] sm:$0x1]
        %v755 = vperm.slane %v753, 0
        %v757 = vadd.f32 %v750, %v755
        %v758 = vld [vmem:[%s1] sm:$0xff]
        %v759 = vadd.f32 %v757, %v758
        %vm760 = vcmask 261120
        %761 = vst.msk [vmem:[#allocation2] sm:$0xff] %vm760, %v759
      $region88: #{transformer_sequential_learner.1} parent=83 // pred_fallthru
        _
      %v762 = vld [vmem:[#allocation2] sm:$0xff]
      %v763 = vpack.c.bf16 %v762, %v762
      %v764 = vld [vmem:[%s677] sm:$0xf]
      %v765 = vld [vmem:[%s677 + $0x4] sm:$0xf]
      %v766 = vld [vmem:[%s677 + $0x8] sm:$0xf]
      %v767 = vld [vmem:[%s677 + $0xc] sm:$0xf]
      %v768 = vld [vmem:[%s680] sm:$0x1]
      %v770 = vperm.slane %v768, 0
      %v776 = vunpack.c.l.b16 %v764
      %v777 = vunpack.c.l.b16 %v765
      %v778 = vunpack.c.l.b16 %v766
      %v779 = vunpack.c.l.b16 %v767
      %v780 = vpack.c.b16 %v777, %v776
      %v781 = vpack.c.b16 %v779, %v778
      %vm784 = vcmask 261120
      %v786 = vsel %vm784, %v763, 0
      %788 = vmatpush.bf16.msra.mxu0 0
      %789 = vmatpush.bf16.msra.mxu0 0
      %790 = vmatpush.bf16.msra.mxu0 0
      %791 = vmatpush.bf16.msra.mxu0 0
      %792 = vmatpush.bf16.msra.mxu0 0
      %793 = vmatpush.bf16.msra.mxu0 0
      %794 = vmatpush.bf16.msra.mxu0 %v781
      %795 = vmatpush.bf16.msra.mxu0 %v780
      %796 = vmatmul.bf16.gmra.mxu0 %v786
      %v797 = vpop.f32.mrf.mxu0
      %v798 = vadd.f32 %v770, %v797
      %v799 = vpop.f32.mrf.mxu0
      %800 = vdwg.mxu0
      %v801 = vpack.c.bf16 %v798, %v798
      %v803 = vunpack.c.l.b16 %v801
      %v804 = vpack.c.b16 %v803, %v803
      %805 = vrot.lane.b32.xlu0 %v804, 96
      %v806 = vpop.permute.xlu0 %805
      %vm807 = vcmask 64512
      %v809 = vsel %vm807, %v801, 0
      %v812 = vsel %vm807, %v806, 0
      %814 = vmatpush.bf16.xpose.msra.mxu0 0
      %815 = vmatpush.bf16.xpose.msra.mxu0 0
      %816 = vmatpush.bf16.xpose.msra.mxu0 0
      %817 = vmatpush.bf16.xpose.msra.mxu0 0
      %818 = vmatpush.bf16.xpose.msra.mxu0 0
      %819 = vmatpush.bf16.xpose.msra.mxu0 0
      %820 = vmatpush.bf16.xpose.msra.mxu0 0
      %821 = vmatpush.bf16.xpose.msra.mxu0 %v812
      %822 = vmatmul.bf16.gmra.mxu0 %v809
      %v823 = vpop.f32.mrf.mxu0
      %v824 = vadd.f32 0.0, %v823
      %v825 = vpop.f32.mrf.mxu0
      %826 = vdwg.mxu0
      %v827 = vmul.f32 %v824, 0.35355338
      %v828 = vsel %vm807, %v827, -inf
      %829 = vmax.xlane.f32.xlu0 %v828
      %v830 = vpop.xlane.xlu0 %829
      %v831 = vsub.f32 %v827, %v830
      %v832 = vmul.f32 %v831, 1.442695
      %v833 = vpow.pop %v832
      %v834 = vsel %vm807, %v833, 0.0
      %835 = vadd.xlane.f32.xlu0 %v834
      %v836 = vpop.xlane.xlu0 %835
      %v837 = vrcp.pop %v836
      %v838 = vmul.f32 %v833, %v837
      %v839 = vpack.c.bf16 %v838, %v838
      %840 = vrot.lane.b32.xlu0 %v804, 64
      %v841 = vpop.permute.xlu0 %840
      %v843 = vsel %vm807, %v839, 0
      %vm845 = vcmask 1043456
      %v847 = vsel %vm845, %v841, 0
      %849 = vmatpush.bf16.msra.mxu0 0
      %850 = vmatpush.bf16.msra.mxu0 0
      %851 = vmatpush.bf16.msra.mxu0 0
      %852 = vmatpush.bf16.msra.mxu0 0
      %853 = vmatpush.bf16.msra.mxu0 0
      %854 = vmatpush.bf16.msra.mxu0 0
      %855 = vmatpush.bf16.msra.mxu0 0
      %856 = vmatpush.bf16.msra.mxu0 %v847
      %857 = vmatmul.bf16.gmra.mxu0 %v843
      %v858 = vpop.f32.mrf.mxu0
      %v859 = vadd.f32 0.0, %v858
      %v860 = vpop.f32.mrf.mxu0
      %861 = vdwg.mxu0
      %862 = vrot.lane.b32.xlu0 %v804, 120
      %v863 = vpop.permute.xlu0 %862
      %864 = vrot.lane.b32.xlu0 %v804, 88
      %v865 = vpop.permute.xlu0 %864
      %v867 = vsel %vm807, %v863, 0
      %v870 = vsel %vm807, %v865, 0
      %872 = vmatpush.bf16.xpose.msra.mxu0 0
      %873 = vmatpush.bf16.xpose.msra.mxu0 0
      %874 = vmatpush.bf16.xpose.msra.mxu0 0
      %875 = vmatpush.bf16.xpose.msra.mxu0 0
      %876 = vmatpush.bf16.xpose.msra.mxu0 0
      %877 = vmatpush.bf16.xpose.msra.mxu0 0
      %878 = vmatpush.bf16.xpose.msra.mxu0 0
      %879 = vmatpush.bf16.xpose.msra.mxu0 %v870
      %880 = vmatmul.bf16.gmra.mxu0 %v867
      %v881 = vpop.f32.mrf.mxu0
      %v882 = vadd.f32 0.0, %v881
      %v883 = vpop.f32.mrf.mxu0
      %884 = vdwg.mxu0
      %v885 = vmul.f32 %v882, 0.35355338
      %v886 = vsel %vm807, %v885, -inf
      %887 = vmax.xlane.f32.xlu0 %v886
      %v888 = vpop.xlane.xlu0 %887
      %v889 = vsub.f32 %v885, %v888
      %v890 = vmul.f32 %v889, 1.442695
      %v891 = vpow.pop %v890
      %v892 = vsel %vm807, %v891, 0.0
      %893 = vadd.xlane.f32.xlu0 %v892
      %v894 = vpop.xlane.xlu0 %893
      %v895 = vrcp.pop %v894
      %v896 = vmul.f32 %v891, %v895
      %v897 = vpack.c.bf16 %v896, %v896
      %898 = vrot.lane.b32.xlu0 %v804, 56
      %v899 = vpop.permute.xlu0 %898
      %v901 = vsel %vm807, %v897, 0
      %v904 = vsel %vm845, %v899, 0
      %906 = vmatpush.bf16.msra.mxu0 0
      %907 = vmatpush.bf16.msra.mxu0 0
      %908 = vmatpush.bf16.msra.mxu0 0
      %909 = vmatpush.bf16.msra.mxu0 0
      %910 = vmatpush.bf16.msra.mxu0 0
      %911 = vmatpush.bf16.msra.mxu0 0
      %912 = vmatpush.bf16.msra.mxu0 0
      %913 = vmatpush.bf16.msra.mxu0 %v904
      %914 = vmatmul.bf16.gmra.mxu0 %v901
      %v915 = vpop.f32.mrf.mxu0
      %v916 = vadd.f32 0.0, %v915
      %v917 = vpop.f32.mrf.mxu0
      %918 = vdwg.mxu0
      %919 = vrot.lane.b32.xlu0 %v804, 112
      %v920 = vpop.permute.xlu0 %919
      %921 = vrot.lane.b32.xlu0 %v804, 80
      %v922 = vpop.permute.xlu0 %921
      %v924 = vsel %vm807, %v920, 0
      %v927 = vsel %vm807, %v922, 0
      %929 = vmatpush.bf16.xpose.msra.mxu0 0
      %930 = vmatpush.bf16.xpose.msra.mxu0 0
      %931 = vmatpush.bf16.xpose.msra.mxu0 0
      %932 = vmatpush.bf16.xpose.msra.mxu0 0
      %933 = vmatpush.bf16.xpose.msra.mxu0 0
      %934 = vmatpush.bf16.xpose.msra.mxu0 0
      %935 = vmatpush.bf16.xpose.msra.mxu0 0
      %936 = vmatpush.bf16.xpose.msra.mxu0 %v927
      %937 = vmatmul.bf16.gmra.mxu0 %v924
      %v938 = vpop.f32.mrf.mxu0
      %v939 = vadd.f32 0.0, %v938
      %v940 = vpop.f32.mrf.mxu0
      %941 = vdwg.mxu0
      %v942 = vmul.f32 %v939, 0.35355338
      %v943 = vsel %vm807, %v942, -inf
      %944 = vmax.xlane.f32.xlu0 %v943
      %v945 = vpop.xlane.xlu0 %944
      %v946 = vsub.f32 %v942, %v945
      %v947 = vmul.f32 %v946, 1.442695
      %v948 = vpow.pop %v947
      %v949 = vsel %vm807, %v948, 0.0
      %950 = vadd.xlane.f32.xlu0 %v949
      %v951 = vpop.xlane.xlu0 %950
      %v952 = vrcp.pop %v951
      %v953 = vmul.f32 %v948, %v952
      %v954 = vpack.c.bf16 %v953, %v953
      %955 = vrot.lane.b32.xlu0 %v804, 48
      %v956 = vpop.permute.xlu0 %955
      %v958 = vsel %vm807, %v954, 0
      %v961 = vsel %vm845, %v956, 0
      %963 = vmatpush.bf16.msra.mxu0 0
      %964 = vmatpush.bf16.msra.mxu0 0
      %965 = vmatpush.bf16.msra.mxu0 0
      %966 = vmatpush.bf16.msra.mxu0 0
      %967 = vmatpush.bf16.msra.mxu0 0
      %968 = vmatpush.bf16.msra.mxu0 0
      %969 = vmatpush.bf16.msra.mxu0 0
      %970 = vmatpush.bf16.msra.mxu0 %v961
      %971 = vmatmul.bf16.gmra.mxu0 %v958
      %v972 = vpop.f32.mrf.mxu0
      %v973 = vadd.f32 0.0, %v972
      %v974 = vpop.f32.mrf.mxu0
      %975 = vdwg.mxu0
      %976 = vrot.lane.b32.xlu0 %v804, 104
      %v977 = vpop.permute.xlu0 %976
      %978 = vrot.lane.b32.xlu0 %v804, 72
      %v979 = vpop.permute.xlu0 %978
      %v981 = vsel %vm807, %v977, 0
      %v984 = vsel %vm807, %v979, 0
      %986 = vmatpush.bf16.xpose.msra.mxu0 0
      %987 = vmatpush.bf16.xpose.msra.mxu0 0
      %988 = vmatpush.bf16.xpose.msra.mxu0 0
      %989 = vmatpush.bf16.xpose.msra.mxu0 0
      %990 = vmatpush.bf16.xpose.msra.mxu0 0
      %991 = vmatpush.bf16.xpose.msra.mxu0 0
      %992 = vmatpush.bf16.xpose.msra.mxu0 0
      %993 = vmatpush.bf16.xpose.msra.mxu0 %v984
      %994 = vmatmul.bf16.gmra.mxu0 %v981
      %v995 = vpop.f32.mrf.mxu0
      %v996 = vadd.f32 0.0, %v995
      %v997 = vpop.f32.mrf.mxu0
      %998 = vdwg.mxu0
      %v999 = vmul.f32 %v996, 0.35355338
      %v1000 = vsel %vm807, %v999, -inf
      %1001 = vmax.xlane.f32.xlu0 %v1000
      %v1002 = vpop.xlane.xlu0 %1001
      %v1003 = vsub.f32 %v999, %v1002
      %v1004 = vmul.f32 %v1003, 1.442695
      %v1005 = vpow.pop %v1004
      %v1006 = vsel %vm807, %v1005, 0.0
      %1007 = vadd.xlane.f32.xlu0 %v1006
      %v1008 = vpop.xlane.xlu0 %1007
      %v1009 = vrcp.pop %v1008
      %v1010 = vmul.f32 %v1005, %v1009
      %v1011 = vpack.c.bf16 %v1010, %v1010
      %1012 = vrot.lane.b32.xlu0 %v804, 40
      %v1013 = vpop.permute.xlu0 %1012
      %v1015 = vsel %vm807, %v1011, 0
      %v1018 = vsel %vm845, %v1013, 0
      %1020 = vmatpush.bf16.msra.mxu0 0
      %1021 = vmatpush.bf16.msra.mxu0 0
      %1022 = vmatpush.bf16.msra.mxu0 0
      %1023 = vmatpush.bf16.msra.mxu0 0
      %1024 = vmatpush.bf16.msra.mxu0 0
      %1025 = vmatpush.bf16.msra.mxu0 0
      %1026 = vmatpush.bf16.msra.mxu0 0
      %1027 = vmatpush.bf16.msra.mxu0 %v1018
      %1028 = vmatmul.bf16.gmra.mxu0 %v1015
      %v1029 = vpop.f32.mrf.mxu0
      %v1030 = vadd.f32 0.0, %v1029
      %v1031 = vpop.f32.mrf.mxu0
      %1032 = vdwg.mxu0
      %1034 = vrot.lane.b32.xlu0 %v916, 8
      %v1035 = vpop.permute.xlu0 %1034
      %1038 = vrot.lane.b32.xlu0 %v973, 16
      %v1039 = vpop.permute.xlu0 %1038
      %1042 = vrot.lane.b32.xlu0 %v1030, 24
      %v1043 = vpop.permute.xlu0 %1042
      %v1045 = vsel %vm807, %v859, %v1035
      %vm1046 = vcmask 130048
      %v1047 = vsel %vm1046, %v1045, %v1039
      %vm1048 = vcmask 195584
      %v1049 = vsel %vm1048, %v1047, %v1043
      %v1050 = vpack.c.bf16 %v1049, %v1049
      %v1051 = vld [vmem:[%s685] sm:$0xf]
      %v1052 = vld [vmem:[%s685 + $0x4] sm:$0xf]
      %v1053 = vld [vmem:[%s685 + $0x8] sm:$0xf]
      %v1054 = vld [vmem:[%s685 + $0xc] sm:$0xf]
      %v1055 = vld [vmem:[%s688] sm:$0x1]
      %v1057 = vperm.slane %v1055, 0
      %v1063 = vunpack.c.l.b16 %v1051
      %v1064 = vunpack.c.l.b16 %v1052
      %v1065 = vunpack.c.l.b16 %v1053
      %v1066 = vunpack.c.l.b16 %v1054
      %v1067 = vpack.c.b16 %v1064, %v1063
      %v1068 = vpack.c.b16 %v1066, %v1065
      %v1072 = vsel %vm784, %v1050, 0
      %1074 = vmatpush.bf16.msra.mxu0 0
      %1075 = vmatpush.bf16.msra.mxu0 0
      %1076 = vmatpush.bf16.msra.mxu0 0
      %1077 = vmatpush.bf16.msra.mxu0 0
      %1078 = vmatpush.bf16.msra.mxu0 0
      %1079 = vmatpush.bf16.msra.mxu0 0
      %1080 = vmatpush.bf16.msra.mxu0 %v1068
      %1081 = vmatpush.bf16.msra.mxu0 %v1067
      %1082 = vmatmul.bf16.gmra.mxu0 %v1072
      %v1083 = vpop.f32.mrf.mxu0
      %v1084 = vadd.f32 %v1057, %v1083
      %v1085 = vpop.f32.mrf.mxu0
      %1086 = vdwg.mxu0
      %v1087 = vadd.f32 %v762, %v1084
      %v1088 = vld [vmem:[%s691] sm:$0x1]
      %v1089 = vld [vmem:[%s694] sm:$0x1]
      %v1090 = vsel %vm784, %v1087, 0.0
      %1091 = vadd.xlane.f32.xlu0 %v1090
      %v1092 = vpop.xlane.xlu0 %1091
      %v1093 = vrcp.pop 32.0
      %v1094 = vmul.f32 32.0, %v1093
      %v1095 = vsub.f32 1.0, %v1094
      %v1096 = vmul.f32 %v1093, %v1095
      %v1097 = vadd.f32 %v1093, %v1096
      %vm1098 = vweird.f32 %v1093
      %v1099 = vsel %vm1098, %v1093, %v1097
      %v1100 = vmul.f32 %v1092, %v1099
      %v1101 = vsub.f32 %v1087, %v1100
      %v1102 = vmul.f32 %v1101, %v1101
      %v1103 = vsel %vm784, %v1102, 0.0
      %1104 = vadd.xlane.f32.xlu0 %v1103
      %v1105 = vpop.xlane.xlu0 %1104
      %v1106 = vmul.f32 %v1105, %v1099
      %v1107 = vadd.f32 %v1106, 1e-05
      %v1108 = vrsqrt.pop %v1107
      %v1109 = vmul.f32 %v1108, %v1107
      %v1110 = vmul.f32 %v1109, %v1108
      %v1111 = vmul.f32 0.5, %v1110
      %v1112 = vsub.f32 1.5, %v1111
      %v1113 = vmul.f32 %v1108, %v1112
      %vm1114 = vweird.f32 %v1107
      %vm1115 = vweird.f32 %v1108
      %vm1116 = vmor %vm1114, %vm1115
      %v1117 = vsel %vm1116, %v1108, %v1113
      %v1118 = vmul.f32 %v1101, %v1117
      %v1120 = vperm.slane %v1088, 0
      %v1122 = vmul.f32 %v1118, %v1120
      %v1124 = vperm.slane %v1089, 0
      %v1126 = vadd.f32 %v1122, %v1124
      %v1127 = vpack.c.bf16 %v1126, %v1126
      %v1128 = vld [vmem:[%s705] sm:$0xf]
      %v1129 = vld [vmem:[%s705 + $0x4] sm:$0xf]
      %v1130 = vld [vmem:[%s705 + $0x8] sm:$0xf]
      %v1131 = vld [vmem:[%s705 + $0xc] sm:$0xf]
      %v1132 = vld [vmem:[%s708] sm:$0x1]
      %v1134 = vperm.slane %v1132, 0
      %v1140 = vunpack.c.l.b16 %v1128
      %v1141 = vunpack.c.l.b16 %v1129
      %v1142 = vunpack.c.l.b16 %v1130
      %v1143 = vunpack.c.l.b16 %v1131
      %v1144 = vpack.c.b16 %v1141, %v1140
      %v1145 = vpack.c.b16 %v1143, %v1142
      %v1149 = vsel %vm784, %v1127, 0
      %1151 = vmatpush.bf16.msra.mxu0 0
      %1152 = vmatpush.bf16.msra.mxu0 0
      %1153 = vmatpush.bf16.msra.mxu0 0
      %1154 = vmatpush.bf16.msra.mxu0 0
      %1155 = vmatpush.bf16.msra.mxu0 0
      %1156 = vmatpush.bf16.msra.mxu0 0
      %1157 = vmatpush.bf16.msra.mxu0 %v1145
      %1158 = vmatpush.bf16.msra.mxu0 %v1144
      %1159 = vmatmul.bf16.gmra.mxu0 %v1149
      %v1160 = vpop.f32.mrf.mxu0
      %v1161 = vadd.f32 %v1134, %v1160
      %v1162 = vpop.f32.mrf.mxu0
      %1163 = vdwg.mxu0
      %v1164 = vmax.f32 %v1161, 0.0
      %v1165 = vpack.c.bf16 %v1164, %v1164
      %v1166 = vld [vmem:[%s713] sm:$0xf]
      %v1167 = vld [vmem:[%s713 + $0x4] sm:$0xf]
      %v1168 = vld [vmem:[%s713 + $0x8] sm:$0xf]
      %v1169 = vld [vmem:[%s713 + $0xc] sm:$0xf]
      %v1170 = vld [vmem:[%s713 + $0x10] sm:$0xf]
      %v1171 = vld [vmem:[%s713 + $0x14] sm:$0xf]
      %v1172 = vld [vmem:[%s713 + $0x18] sm:$0xf]
      %v1173 = vld [vmem:[%s713 + $0x1c] sm:$0xf]
      %v1174 = vld [vmem:[%s713 + $0x20] sm:$0xf]
      %v1175 = vld [vmem:[%s713 + $0x24] sm:$0xf]
      %v1176 = vld [vmem:[%s713 + $0x28] sm:$0xf]
      %v1177 = vld [vmem:[%s713 + $0x2c] sm:$0xf]
      %v1178 = vld [vmem:[%s713 + $0x30] sm:$0xf]
      %v1179 = vld [vmem:[%s713 + $0x34] sm:$0xf]
      %v1180 = vld [vmem:[%s713 + $0x38] sm:$0xf]
      %v1181 = vld [vmem:[%s713 + $0x3c] sm:$0xf]
      %v1182 = vld [vmem:[%s716] sm:$0x1]
      %v1184 = vperm.slane %v1182, 0
      %v1202 = vunpack.c.l.b16 %v1166
      %v1203 = vunpack.c.l.b16 %v1167
      %v1204 = vunpack.c.l.b16 %v1168
      %v1205 = vunpack.c.l.b16 %v1169
      %v1206 = vunpack.c.l.b16 %v1170
      %v1207 = vunpack.c.l.b16 %v1171
      %v1208 = vunpack.c.l.b16 %v1172
      %v1209 = vunpack.c.l.b16 %v1173
      %v1210 = vunpack.c.l.b16 %v1174
      %v1211 = vunpack.c.l.b16 %v1175
      %v1212 = vunpack.c.l.b16 %v1176
      %v1213 = vunpack.c.l.b16 %v1177
      %v1214 = vunpack.c.l.b16 %v1178
      %v1215 = vunpack.c.l.b16 %v1179
      %v1216 = vunpack.c.l.b16 %v1180
      %v1217 = vunpack.c.l.b16 %v1181
      %v1218 = vpack.c.b16 %v1203, %v1202
      %v1219 = vpack.c.b16 %v1205, %v1204
      %v1220 = vpack.c.b16 %v1207, %v1206
      %v1221 = vpack.c.b16 %v1209, %v1208
      %v1222 = vpack.c.b16 %v1211, %v1210
      %v1223 = vpack.c.b16 %v1213, %v1212
      %v1224 = vpack.c.b16 %v1215, %v1214
      %v1225 = vpack.c.b16 %v1217, %v1216
      %1234 = vmatpush.bf16.msra.mxu0 %v1225
      %1235 = vmatpush.bf16.msra.mxu0 %v1224
      %1236 = vmatpush.bf16.msra.mxu0 %v1223
      %1237 = vmatpush.bf16.msra.mxu0 %v1222
      %1238 = vmatpush.bf16.msra.mxu0 %v1221
      %1239 = vmatpush.bf16.msra.mxu0 %v1220
      %1240 = vmatpush.bf16.msra.mxu0 %v1219
      %1241 = vmatpush.bf16.msra.mxu0 %v1218
      %1242 = vmatmul.bf16.gmra.mxu0 %v1165
      %v1243 = vpop.f32.mrf.mxu0
      %v1244 = vadd.f32 %v1184, %v1243
      %v1245 = vpop.f32.mrf.mxu0
      %1246 = vdwg.mxu0
      %v1247 = vadd.f32 %v1126, %v1244
      %v1248 = vld [vmem:[%s697] sm:$0x1]
      %v1249 = vld [vmem:[%s700] sm:$0x1]
      %v1250 = vsel %vm784, %v1247, 0.0
      %1251 = vadd.xlane.f32.xlu0 %v1250
      %v1252 = vpop.xlane.xlu0 %1251
      %v1253 = vmul.f32 %v1252, %v1099
      %v1254 = vsub.f32 %v1247, %v1253
      %v1255 = vmul.f32 %v1254, %v1254
      %v1256 = vsel %vm784, %v1255, 0.0
      %1257 = vadd.xlane.f32.xlu0 %v1256
      %v1258 = vpop.xlane.xlu0 %1257
      %v1259 = vmul.f32 %v1258, %v1099
      %v1260 = vadd.f32 %v1259, 1e-05
      %v1261 = vrsqrt.pop %v1260
      %v1262 = vmul.f32 %v1261, %v1260
      %v1263 = vmul.f32 %v1262, %v1261
      %v1264 = vmul.f32 0.5, %v1263
      %v1265 = vsub.f32 1.5, %v1264
      %v1266 = vmul.f32 %v1261, %v1265
      %vm1267 = vweird.f32 %v1260
      %vm1268 = vweird.f32 %v1261
      %vm1269 = vmor %vm1267, %vm1268
      %v1270 = vsel %vm1269, %v1261, %v1266
      %v1271 = vmul.f32 %v1254, %v1270
      %v1273 = vperm.slane %v1248, 0
      %v1275 = vmul.f32 %v1271, %v1273
      %v1277 = vperm.slane %v1249, 0
      %v1279 = vadd.f32 %v1275, %v1277
      %1280 = vst.msk [vmem:[#allocation2] sm:$0xff] %vm784, %v1279
      %p1281 = scmp.eq.s32.totalorder %s32, 1
      // Predicated region
      $region89: #{transformer_sequential_learner.1} parent=83 // pred_check
        %p1282 = pneg %p1281
      $region90: #{transformer_sequential_learner.1} parent=83 // pred_check_branch
        %1284 = sbr.rel (%p1282) target = $region92
      $region91: #{transformer_sequential_learner.1} parent=83 // pred_region
        %1285 = vst.msk [vmem:[%s720] sm:$0xff] %vm784, %v1279
      $region92: #{transformer_sequential_learner.1} parent=83 // pred_fallthru
        _
      %p1286 = scmp.lt.s32.totalorder %s31, 1
      %s1287 = scalar_select %p1286, %s31, 1
      %s1288 = smul.addr %s1287, 8
      %s1289 = scalar_lea.vmem %s16, %s1288
      // Predicated region
      $region93: #{transformer_sequential_learner.1} parent=83 // pred_check
        %p1290 = pneg %p458
      $region94: #{transformer_sequential_learner.1} parent=83 // pred_check_branch
        %1292 = sbr.rel (%p1290) target = $region96
      $region95: #{transformer_sequential_learner.1} parent=83 // pred_region
        _
      $region96: #{transformer_sequential_learner.1} parent=83 // pred_fallthru
        _
    $region84: #{transformer_sequential_learner.1} parent=5 // pred_fallthru
      _
    %p1293 = scmp.le.s32.totalorder 2, %s22
    // Predicated region
    $region97: #{transformer_sequential_learner.1} parent=5 // pred_check
      %p1294 = pneg %p1293
    $region98: #{transformer_sequential_learner.1} parent=5 // pred_check_branch
      %1296 = sbr.rel (%p1294) target = $region100
    $region99: #{transformer_sequential_learner.1} parent=5 // pred_region
      %s1297 = ssub.s32 %s22, 2
      // Predicated region
      $region101: #{transformer_sequential_learner.1} parent=99 // pred_check
        %p1298 = pneg %p464
      $region102: #{transformer_sequential_learner.1} parent=99 // pred_check_branch
        %1300 = sbr.rel (%p1298) target = $region104
      $region103: #{transformer_sequential_learner.1} parent=99 // pred_region
        %p1301 = scmp.lt.s32.totalorder %s33, 1
        %s1302 = scalar_select %p1301, %s33, 1
        %s1303 = smul.addr %s1302, 8
        %s1304 = scalar_lea.vmem %s16, %s1303
      $region104: #{transformer_sequential_learner.1} parent=99 // pred_fallthru
        _
    $region100: #{transformer_sequential_learner.1} parent=5 // pred_fallthru
      _
  $region6: #{transformer_sequential_learner.1} parent=0 // loop_footer
    %s26 = sadd.s32 1, %s22
  $region7: #{transformer_sequential_learner.1} parent=0 // loop_footer_branch
    %21 = sbr.rel target = $region3
  $region8: #{transformer_sequential_learner.1} parent=0 // loop_exit
    _

</llo_original>
